<compile_context>
chip_gen: v5e
topology: v5e:2x2
jax: 0.10.0
libtpu: 0.0.40
codegen_flags: <defaults>
</compile_context>

<pallas_src>
import jax
import jax.numpy as jnp
import numpy as np
from jax.experimental import pallas as pl
from jax.experimental.pallas import tpu as pltpu

EPS = 1e-5  # torch.nn.LayerNorm default eps


def _layernorm(v, gamma, beta):
    """LayerNorm over the last axis (canonical two-pass form, f32)."""
    mu = jnp.mean(v, axis=-1, keepdims=True)
    d = v - mu
    var = jnp.mean(d * d, axis=-1, keepdims=True)
    return d * jax.lax.rsqrt(var + EPS) * gamma + beta


# ---------------------------------------------------------------------------
# Kernel 1: hoisted input projection + its LayerNorm (no recurrence):
#           ih_norm = LN_ih(x @ W_ih + b_ih)
# ---------------------------------------------------------------------------
def _input_proj_ln_kernel(x_ref, w_ref, b_ref, g_ref, be_ref, o_ref):
    ih = (jnp.dot(x_ref[...], w_ref[...], preferred_element_type=jnp.float32)
          + b_ref[...])
    o_ref[...] = _layernorm(ih, g_ref[...], be_ref[...]).astype(o_ref.dtype)


# ---------------------------------------------------------------------------
# Kernel 2: recurrent steps; the time loop is the inner grid axis, (h, c)
#           state is carried in VMEM scratch.
# ---------------------------------------------------------------------------
def _lnlstm_seq_kernel(ihn_ref, hx0_ref, cx0_ref, w_hh_ref, p3h_ref, ph_ref,
                       hseq_ref, cseq_ref, h_st, c_st):
    t = pl.program_id(1)

    @pl.when(t == 0)
    def _():  # (re)load initial state at the start of every batch tile
        h_st[...] = hx0_ref[...].astype(jnp.float32)
        c_st[...] = cx0_ref[...].astype(jnp.float32)

    h = h_st[...]
    c = c_st[...]
    p3h = p3h_ref[...]   # (3, 4H): [b_hh, g_hh, be_hh]
    ph = ph_ref[...]     # (4, H) : [g_ho, be_ho, g_ht, be_ht]

    # hh = h @ W_hh + b_hh   (W_hh stays resident in VMEM across all steps)
    hh = jnp.dot(h, w_hh_ref[...], preferred_element_type=jnp.float32) + p3h[0:1, :]

    # gates = LN_ih(ih) (precomputed) + LN_hh(hh)
    gates = ihn_ref[0].astype(jnp.float32) + _layernorm(hh, p3h[1:2, :], p3h[2:3, :])

    H = h_st.shape[-1]
    ingate = jax.nn.sigmoid(gates[:, 0 * H:1 * H])
    forgetgate = jax.nn.sigmoid(gates[:, 1 * H:2 * H])
    cellgate = jnp.tanh(gates[:, 2 * H:3 * H])
    outgate = jax.nn.sigmoid(gates[:, 3 * H:4 * H])

    cy = forgetgate * c + ingate * cellgate
    hy = _layernorm(
        outgate * jnp.tanh(_layernorm(cy, ph[0:1, :], ph[1:2, :])),
        ph[2:3, :], ph[3:4, :])

    h_st[...] = hy
    c_st[...] = cy
    hseq_ref[0] = hy.astype(hseq_ref.dtype)
    cseq_ref[0] = cy.astype(cseq_ref.dtype)


def layer_norm_lstm(x_seq, hx, cx, params, *, batch_tile=8):
    """Run the LayerNorm-LSTM cell over a sequence.

    x_seq: (T, B, D_in); hx, cx: (B, H). Returns (h_seq, c_seq), each (T, B, H).
    """
    T, B, D_in = x_seq.shape
    _, H = hx.shape
    G = 4 * H

    # ---- 1) Hoisted input projection + LN_ih: row-tiled parallel matmul.
    rows = T * B
    rm = rows
    if rows > 1024:
        for cand in (1024, 512, 256, 128):
            if rows % cand == 0:
                rm = cand
                break
    x2d = x_seq.reshape(rows, D_in)

    ih_flat = pl.pallas_call(
        _input_proj_ln_kernel,
        out_shape=jax.ShapeDtypeStruct((rows, G), jnp.float32),
        grid_spec=pltpu.PrefetchScalarGridSpec(
            num_scalar_prefetch=0,
            grid=(rows // rm,),
            in_specs=[
                pl.BlockSpec((rm, D_in), lambda i: (i, 0)),   # x rows
                pl.BlockSpec((D_in, G), lambda i: (0, 0)),    # W_ih (resident)
                pl.BlockSpec((1, G), lambda i: (0, 0)),       # b_ih
                pl.BlockSpec((1, G), lambda i: (0, 0)),       # g_ih
                pl.BlockSpec((1, G), lambda i: (0, 0)),       # be_ih
            ],
            out_specs=pl.BlockSpec((rm, G), lambda i: (i, 0)),
        ),
        compiler_params=pltpu.CompilerParams(
            dimension_semantics=("parallel",)),
    )(x2d, params["w_ih"], params["b_ih"], params["g_ih"], params["be_ih"])
    ih_norm = ih_flat.reshape(T, B, G)

    # ---- 2) Coalesce the tiny per-channel params into two resident arrays.
    p3h = jnp.concatenate(
        [params["b_hh"], params["g_hh"], params["be_hh"]], axis=0)   # (3, 4H)
    ph = jnp.concatenate(
        [params["g_ho"], params["be_ho"], params["g_ht"], params["be_ht"]],
        axis=0)                                                      # (4, H)

    bt = batch_tile if (B % batch_tile == 0 and batch_tile % 8 == 0) else B
    grid = (B // bt, T)

    cost = pl.CostEstimate(
        flops=int(T * B * (2 * H * G + 16 * G + 30 * H)),
        transcendentals=int(T * B * (G + 5 * H)),
        bytes_accessed=int(4 * (T * B * G + 2 * T * B * H + H * G
                                + 3 * G + 4 * H + 2 * B * H)),
    )

    h_seq, c_seq = pl.pallas_call(
        _lnlstm_seq_kernel,
        out_shape=(jax.ShapeDtypeStruct((T, B, H), jnp.float32),
                   jax.ShapeDtypeStruct((T, B, H), jnp.float32)),
        grid_spec=pltpu.PrefetchScalarGridSpec(
            num_scalar_prefetch=0,
            grid=grid,
            in_specs=[
                pl.BlockSpec((1, bt, G), lambda b, t: (t, b, 0)),  # ih_norm per step
                pl.BlockSpec((bt, H), lambda b, t: (b, 0)),        # hx0
                pl.BlockSpec((bt, H), lambda b, t: (b, 0)),        # cx0
                pl.BlockSpec((H, G), lambda b, t: (0, 0)),         # W_hh (resident)
                pl.BlockSpec((3, G), lambda b, t: (0, 0)),         # p3h  (resident)
                pl.BlockSpec((4, H), lambda b, t: (0, 0)),         # ph   (resident)
            ],
            out_specs=(
                pl.BlockSpec((1, bt, H), lambda b, t: (t, b, 0)),
                pl.BlockSpec((1, bt, H), lambda b, t: (t, b, 0)),
            ),
            scratch_shapes=[pltpu.VMEM((bt, H), jnp.float32),   # h state carry
                            pltpu.VMEM((bt, H), jnp.float32)],  # c state carry
        ),
        compiler_params=pltpu.CompilerParams(
            dimension_semantics=("parallel", "arbitrary")),
        cost_estimate=cost,
    )(ih_norm, hx, cx, params["w_hh"], p3h, ph)
    return h_seq, c_seq


def layer_norm_lstm_cell(x, hx, cx, params):
    """Single-step forward matching LayerNormLSTMCell.forward. Returns (hy, cy)."""
    h_seq, c_seq = layer_norm_lstm(x[None], hx, cx, params)
    return h_seq[0], c_seq[0]


# ---------------------------------------------------------------------------
# Pure-JAX reference for validation.
# ---------------------------------------------------------------------------
def reference_cell(x, hx, cx, p):
    hp = jax.lax.Precision.HIGHEST
    ih = jnp.dot(x, p["w_ih"], precision=hp) + p["b_ih"]
    hh = jnp.dot(hx, p["w_hh"], precision=hp) + p["b_hh"]
    gates = (_layernorm(ih, p["g_ih"], p["be_ih"]) +
             _layernorm(hh, p["g_hh"], p["be_hh"]))
    H = hx.shape[-1]
    i = jax.nn.sigmoid(gates[:, 0 * H:1 * H])
    f = jax.nn.sigmoid(gates[:, 1 * H:2 * H])
    g = jnp.tanh(gates[:, 2 * H:3 * H])
    o = jax.nn.sigmoid(gates[:, 3 * H:4 * H])
    cy = f * cx + i * g
    hy = _layernorm(o * jnp.tanh(_layernorm(cy, p["g_ho"], p["be_ho"])),
                    p["g_ht"], p["be_ht"])
    return hy, cy


if __name__ == "__main__":
    # Small but lane-aligned shapes: H is a multiple of 128 so gate slices and
    # hy/cy stores are lane-dense; B=16 with batch_tile=8 exercises the
    # parallel batch grid axis.
    T, B, D_IN, H = 8, 16, 64, 128

    key = jax.random.PRNGKey(0)
    ks = jax.random.split(key, 16)

    x_seq = jax.random.normal(ks[0], (T, B, D_IN), dtype=jnp.float32)
    hx = jax.random.normal(ks[1], (B, H), dtype=jnp.float32)
    cx = jax.random.normal(ks[2], (B, H), dtype=jnp.float32)

    scale_ih = 1.0 / np.sqrt(D_IN)
    scale_hh = 1.0 / np.sqrt(H)
    params = {
        "w_ih": jax.random.uniform(ks[3], (D_IN, 4 * H), jnp.float32, -scale_ih, scale_ih),
        "b_ih": jax.random.uniform(ks[4], (1, 4 * H), jnp.float32, -scale_ih, scale_ih),
        "w_hh": jax.random.uniform(ks[5], (H, 4 * H), jnp.float32, -scale_hh, scale_hh),
        "b_hh": jax.random.uniform(ks[6], (1, 4 * H), jnp.float32, -scale_hh, scale_hh),
        "g_ih": 1.0 + 0.1 * jax.random.normal(ks[7], (1, 4 * H), jnp.float32),
        "be_ih": 0.1 * jax.random.normal(ks[8], (1, 4 * H), jnp.float32),
        "g_hh": 1.0 + 0.1 * jax.random.normal(ks[9], (1, 4 * H), jnp.float32),
        "be_hh": 0.1 * jax.random.normal(ks[10], (1, 4 * H), jnp.float32),
        "g_ho": 1.0 + 0.1 * jax.random.normal(ks[11], (1, H), jnp.float32),
        "be_ho": 0.1 * jax.random.normal(ks[12], (1, H), jnp.float32),
        "g_ht": 1.0 + 0.1 * jax.random.normal(ks[13], (1, H), jnp.float32),
        "be_ht": 0.1 * jax.random.normal(ks[14], (1, H), jnp.float32),
    }

    # Pallas: whole sequence, recurrence inside one kernel call.
    h_seq, c_seq = jax.jit(layer_norm_lstm)(x_seq, hx, cx, params)
    jax.block_until_ready((h_seq, c_seq))

    # Reference: python loop of the per-step cell.
    h, c = hx, cx
    hs, cs = [], []
    for t in range(T):
        h, c = reference_cell(x_seq[t], h, c, params)
        hs.append(h)
        cs.append(c)
    h_ref = jnp.stack(hs)
    c_ref = jnp.stack(cs)

    np.testing.assert_allclose(np.asarray(h_seq), np.asarray(h_ref), rtol=1e-4, atol=1e-4)
    np.testing.assert_allclose(np.asarray(c_seq), np.asarray(c_ref), rtol=1e-4, atol=1e-4)

    # Single-step wrapper (the module's forward signature) sanity check.
    hy1, cy1 = jax.jit(layer_norm_lstm_cell)(x_seq[0], hx, cx, params)
    jax.block_until_ready((hy1, cy1))
    hy1_ref, cy1_ref = reference_cell(x_seq[0], hx, cx, params)
    np.testing.assert_allclose(np.asarray(hy1), np.asarray(hy1_ref), rtol=1e-4, atol=1e-4)
    np.testing.assert_allclose(np.asarray(cy1), np.asarray(cy1_ref), rtol=1e-4, atol=1e-4)

    print("KERNEL_OK")
</pallas_src>

<mosaic_0001>
module attributes {stable_mosaic.version = 11 : i64} {
  func.func @_lnlstm_seq_kernel(%arg0: i32, %arg1: i32, %arg2: memref<1x8x512xf32, #tpu.memory_space<vmem>>, %arg3: memref<8x128xf32, #tpu.memory_space<vmem>>, %arg4: memref<8x128xf32, #tpu.memory_space<vmem>>, %arg5: memref<128x512xf32, #tpu.memory_space<vmem>>, %arg6: memref<3x512xf32, #tpu.memory_space<vmem>>, %arg7: memref<4x128xf32, #tpu.memory_space<vmem>>, %arg8: memref<1x8x128xf32, #tpu.memory_space<vmem>>, %arg9: memref<1x8x128xf32, #tpu.memory_space<vmem>>, %arg10: memref<8x128xf32, #tpu.memory_space<vmem>>, %arg11: memref<8x128xf32, #tpu.memory_space<vmem>>) attributes {dimension_semantics = [#tpu.dimension_semantics<parallel>, #tpu.dimension_semantics<arbitrary>], iteration_bounds = array<i64: 2, 8>, scalar_prefetch = 0 : i64, scratch_operands = 2 : i64, tpu.core_type = #tpu.core_type<tc>, window_params = [{transform_indices = @transform_0, window_bounds = array<i64: 1, 8, 512>}, {transform_indices = @transform_1, window_bounds = array<i64: 8, 128>}, {transform_indices = @transform_2, window_bounds = array<i64: 8, 128>}, {pipeline_mode = #tpu.pipeline_mode<synchronous>, transform_indices = @transform_3, window_bounds = array<i64: 128, 512>}, {pipeline_mode = #tpu.pipeline_mode<synchronous>, transform_indices = @transform_4, window_bounds = array<i64: 3, 512>}, {pipeline_mode = #tpu.pipeline_mode<synchronous>, transform_indices = @transform_5, window_bounds = array<i64: 4, 128>}, {transform_indices = @transform_6, window_bounds = array<i64: 1, 8, 128>}, {transform_indices = @transform_7, window_bounds = array<i64: 1, 8, 128>}]} {
    %c0_i32 = arith.constant 0 : i32
    %0 = arith.cmpi eq, %arg1, %c0_i32 : i32
    %1 = arith.extui %0 : i1 to i32
    %c0_i32_0 = arith.constant 0 : i32
    %2 = arith.cmpi ne, %1, %c0_i32_0 : i32
    scf.if %2 {
      %c0_41 = arith.constant 0 : index
      %c0_42 = arith.constant 0 : index
      %114 = vector.load %arg3[%c0_41, %c0_42] : memref<8x128xf32, #tpu.memory_space<vmem>>, vector<8x128xf32>
      %c0_43 = arith.constant 0 : index
      %c0_44 = arith.constant 0 : index
      %115 = vector.load %arg10[%c0_43, %c0_44] : memref<8x128xf32, #tpu.memory_space<vmem>>, vector<8x128xf32>
      tpu.vector_store %arg10[%c0_43, %c0_44], %114 {strides = array<i32>} : memref<8x128xf32, #tpu.memory_space<vmem>>, vector<8x128xf32>,
      %c0_45 = arith.constant 0 : index
      %c0_46 = arith.constant 0 : index
      %116 = vector.load %arg4[%c0_45, %c0_46] : memref<8x128xf32, #tpu.memory_space<vmem>>, vector<8x128xf32>
      %c0_47 = arith.constant 0 : index
      %c0_48 = arith.constant 0 : index
      %117 = vector.load %arg11[%c0_47, %c0_48] : memref<8x128xf32, #tpu.memory_space<vmem>>, vector<8x128xf32>
      tpu.vector_store %arg11[%c0_47, %c0_48], %116 {strides = array<i32>} : memref<8x128xf32, #tpu.memory_space<vmem>>, vector<8x128xf32>,
    } else {
    }
    %c0 = arith.constant 0 : index
    %c0_1 = arith.constant 0 : index
    %3 = vector.load %arg10[%c0, %c0_1] : memref<8x128xf32, #tpu.memory_space<vmem>>, vector<8x128xf32>
    %c0_2 = arith.constant 0 : index
    %c0_3 = arith.constant 0 : index
    %4 = vector.load %arg11[%c0_2, %c0_3] : memref<8x128xf32, #tpu.memory_space<vmem>>, vector<8x128xf32>
    %c0_4 = arith.constant 0 : index
    %c0_5 = arith.constant 0 : index
    %5 = vector.load %arg6[%c0_4, %c0_5] : memref<3x512xf32, #tpu.memory_space<vmem>>, vector<3x512xf32>
    %c0_6 = arith.constant 0 : index
    %c0_7 = arith.constant 0 : index
    %6 = vector.load %arg7[%c0_6, %c0_7] : memref<4x128xf32, #tpu.memory_space<vmem>>, vector<4x128xf32>
    %c0_8 = arith.constant 0 : index
    %c0_9 = arith.constant 0 : index
    %7 = vector.load %arg5[%c0_8, %c0_9] : memref<128x512xf32, #tpu.memory_space<vmem>>, vector<128x512xf32>
    %cst = arith.constant dense<0.000000e+00> : vector<8x512xf32>
    %8 = tpu.matmul %3, %7, %cst {dimension_numbers = #tpu.dot_dimension_numbers<[1], [0], [0], [1], [0, 0, 1, 1], [], []>} : vector<8x128xf32>, vector<128x512xf32>, vector<8x512xf32> -> vector<8x512xf32>
    %9 = vector.extract_strided_slice %5 {offsets = [0, 0], sizes = [1, 512], strides = [1, 1]} : vector<3x512xf32> to vector<1x512xf32>
    %10 = vector.broadcast %9 : vector<1x512xf32> to vector<8x512xf32>
    %11 = arith.addf %8, %10 : vector<8x512xf32>
    %c0_10 = arith.constant 0 : index
    %c0_11 = arith.constant 0 : index
    %c0_12 = arith.constant 0 : index
    %12 = vector.load %arg2[%c0_10, %c0_11, %c0_12] : memref<1x8x512xf32, #tpu.memory_space<vmem>>, vector<1x8x512xf32>
    %13 = vector.shape_cast %12 : vector<1x8x512xf32> to vector<8x512xf32>
    %14 = vector.extract_strided_slice %5 {offsets = [1, 0], sizes = [1, 512], strides = [1, 1]} : vector<3x512xf32> to vector<1x512xf32>
    %15 = vector.extract_strided_slice %5 {offsets = [2, 0], sizes = [1, 512], strides = [1, 1]} : vector<3x512xf32> to vector<1x512xf32>
    %cst_13 = arith.constant dense<0.000000e+00> : vector<8xf32>
    %16 = vector.multi_reduction <add>, %11, %cst_13 [1] : vector<8x512xf32> to vector<8xf32>
    %17 = vector.shape_cast %16 : vector<8xf32> to vector<8x1xf32>
    %cst_14 = arith.constant 5.120000e+02 : f32
    %18 = vector.broadcast %cst_14 : f32 to vector<8x1xf32>
    %19 = arith.divf %17, %18 : vector<8x1xf32>
    %20 = vector.broadcast %19 : vector<8x1xf32> to vector<8x512xf32>
    %21 = arith.subf %11, %20 : vector<8x512xf32>
    %22 = arith.mulf %21, %21 : vector<8x512xf32>
    %cst_15 = arith.constant dense<0.000000e+00> : vector<8xf32>
    %23 = vector.multi_reduction <add>, %22, %cst_15 [1] : vector<8x512xf32> to vector<8xf32>
    %24 = vector.shape_cast %23 : vector<8xf32> to vector<8x1xf32>
    %cst_16 = arith.constant 5.120000e+02 : f32
    %25 = vector.broadcast %cst_16 : f32 to vector<8x1xf32>
    %26 = arith.divf %24, %25 : vector<8x1xf32>
    %cst_17 = arith.constant 9.99999974E-6 : f32
    %27 = vector.broadcast %cst_17 : f32 to vector<8x1xf32>
    %28 = arith.addf %26, %27 : vector<8x1xf32>
    %29 = math.rsqrt %28 : vector<8x1xf32>
    %30 = vector.broadcast %29 : vector<8x1xf32> to vector<8x512xf32>
    %31 = arith.mulf %21, %30 : vector<8x512xf32>
    %32 = vector.broadcast %14 : vector<1x512xf32> to vector<8x512xf32>
    %33 = arith.mulf %31, %32 : vector<8x512xf32>
    %34 = vector.broadcast %15 : vector<1x512xf32> to vector<8x512xf32>
    %35 = arith.addf %33, %34 : vector<8x512xf32>
    %36 = arith.addf %13, %35 : vector<8x512xf32>
    %37 = vector.extract_strided_slice %36 {offsets = [0, 0], sizes = [8, 128], strides = [1, 1]} : vector<8x512xf32> to vector<8x128xf32>
    %38 = arith.negf %37 : vector<8x128xf32>
    %39 = math.exp %38 : vector<8x128xf32>
    %cst_18 = arith.constant 1.000000e+00 : f32
    %40 = vector.broadcast %cst_18 : f32 to vector<8x128xf32>
    %41 = arith.addf %40, %39 : vector<8x128xf32>
    %42 = arith.divf %40, %41 : vector<8x128xf32>
    %43 = vector.extract_strided_slice %36 {offsets = [0, 128], sizes = [8, 128], strides = [1, 1]} : vector<8x512xf32> to vector<8x128xf32>
    %44 = arith.negf %43 : vector<8x128xf32>
    %45 = math.exp %44 : vector<8x128xf32>
    %cst_19 = arith.constant 1.000000e+00 : f32
    %46 = vector.broadcast %cst_19 : f32 to vector<8x128xf32>
    %47 = arith.addf %46, %45 : vector<8x128xf32>
    %48 = arith.divf %46, %47 : vector<8x128xf32>
    %49 = vector.extract_strided_slice %36 {offsets = [0, 256], sizes = [8, 128], strides = [1, 1]} : vector<8x512xf32> to vector<8x128xf32>
    %50 = math.tanh %49 : vector<8x128xf32>
    %51 = vector.extract_strided_slice %36 {offsets = [0, 384], sizes = [8, 128], strides = [1, 1]} : vector<8x512xf32> to vector<8x128xf32>
    %52 = arith.negf %51 : vector<8x128xf32>
    %53 = math.exp %52 : vector<8x128xf32>
    %cst_20 = arith.constant 1.000000e+00 : f32
    %54 = vector.broadcast %cst_20 : f32 to vector<8x128xf32>
    %55 = arith.addf %54, %53 : vector<8x128xf32>
    %56 = arith.divf %54, %55 : vector<8x128xf32>
    %57 = arith.mulf %48, %4 : vector<8x128xf32>
    %58 = arith.mulf %42, %50 : vector<8x128xf32>
    %59 = arith.addf %57, %58 : vector<8x128xf32>
    %60 = vector.extract_strided_slice %6 {offsets = [0, 0], sizes = [1, 128], strides = [1, 1]} : vector<4x128xf32> to vector<1x128xf32>
    %61 = vector.extract_strided_slice %6 {offsets = [1, 0], sizes = [1, 128], strides = [1, 1]} : vector<4x128xf32> to vector<1x128xf32>
    %cst_21 = arith.constant dense<0.000000e+00> : vector<8xf32>
    %62 = vector.multi_reduction <add>, %59, %cst_21 [1] : vector<8x128xf32> to vector<8xf32>
    %63 = vector.shape_cast %62 : vector<8xf32> to vector<8x1xf32>
    %cst_22 = arith.constant 1.280000e+02 : f32
    %64 = vector.broadcast %cst_22 : f32 to vector<8x1xf32>
    %65 = arith.divf %63, %64 : vector<8x1xf32>
    %66 = vector.broadcast %65 : vector<8x1xf32> to vector<8x128xf32>
    %67 = arith.subf %59, %66 : vector<8x128xf32>
    %68 = arith.mulf %67, %67 : vector<8x128xf32>
    %cst_23 = arith.constant dense<0.000000e+00> : vector<8xf32>
    %69 = vector.multi_reduction <add>, %68, %cst_23 [1] : vector<8x128xf32> to vector<8xf32>
    %70 = vector.shape_cast %69 : vector<8xf32> to vector<8x1xf32>
    %cst_24 = arith.constant 1.280000e+02 : f32
    %71 = vector.broadcast %cst_24 : f32 to vector<8x1xf32>
    %72 = arith.divf %70, %71 : vector<8x1xf32>
    %cst_25 = arith.constant 9.99999974E-6 : f32
    %73 = vector.broadcast %cst_25 : f32 to vector<8x1xf32>
    %74 = arith.addf %72, %73 : vector<8x1xf32>
    %75 = math.rsqrt %74 : vector<8x1xf32>
    %76 = vector.broadcast %75 : vector<8x1xf32> to vector<8x128xf32>
    %77 = arith.mulf %67, %76 : vector<8x128xf32>
    %78 = vector.broadcast %60 : vector<1x128xf32> to vector<8x128xf32>
    %79 = arith.mulf %77, %78 : vector<8x128xf32>
    %80 = vector.broadcast %61 : vector<1x128xf32> to vector<8x128xf32>
    %81 = arith.addf %79, %80 : vector<8x128xf32>
    %82 = math.tanh %81 : vector<8x128xf32>
    %83 = arith.mulf %56, %82 : vector<8x128xf32>
    %84 = vector.extract_strided_slice %6 {offsets = [2, 0], sizes = [1, 128], strides = [1, 1]} : vector<4x128xf32> to vector<1x128xf32>
    %85 = vector.extract_strided_slice %6 {offsets = [3, 0], sizes = [1, 128], strides = [1, 1]} : vector<4x128xf32> to vector<1x128xf32>
    %cst_26 = arith.constant dense<0.000000e+00> : vector<8xf32>
    %86 = vector.multi_reduction <add>, %83, %cst_26 [1] : vector<8x128xf32> to vector<8xf32>
    %87 = vector.shape_cast %86 : vector<8xf32> to vector<8x1xf32>
    %cst_27 = arith.constant 1.280000e+02 : f32
    %88 = vector.broadcast %cst_27 : f32 to vector<8x1xf32>
    %89 = arith.divf %87, %88 : vector<8x1xf32>
    %90 = vector.broadcast %89 : vector<8x1xf32> to vector<8x128xf32>
    %91 = arith.subf %83, %90 : vector<8x128xf32>
    %92 = arith.mulf %91, %91 : vector<8x128xf32>
    %cst_28 = arith.constant dense<0.000000e+00> : vector<8xf32>
    %93 = vector.multi_reduction <add>, %92, %cst_28 [1] : vector<8x128xf32> to vector<8xf32>
    %94 = vector.shape_cast %93 : vector<8xf32> to vector<8x1xf32>
    %cst_29 = arith.constant 1.280000e+02 : f32
    %95 = vector.broadcast %cst_29 : f32 to vector<8x1xf32>
    %96 = arith.divf %94, %95 : vector<8x1xf32>
    %cst_30 = arith.constant 9.99999974E-6 : f32
    %97 = vector.broadcast %cst_30 : f32 to vector<8x1xf32>
    %98 = arith.addf %96, %97 : vector<8x1xf32>
    %99 = math.rsqrt %98 : vector<8x1xf32>
    %100 = vector.broadcast %99 : vector<8x1xf32> to vector<8x128xf32>
    %101 = arith.mulf %91, %100 : vector<8x128xf32>
    %102 = vector.broadcast %84 : vector<1x128xf32> to vector<8x128xf32>
    %103 = arith.mulf %101, %102 : vector<8x128xf32>
    %104 = vector.broadcast %85 : vector<1x128xf32> to vector<8x128xf32>
    %105 = arith.addf %103, %104 : vector<8x128xf32>
    %c0_31 = arith.constant 0 : index
    %c0_32 = arith.constant 0 : index
    %106 = vector.load %arg10[%c0_31, %c0_32] : memref<8x128xf32, #tpu.memory_space<vmem>>, vector<8x128xf32>
    tpu.vector_store %arg10[%c0_31, %c0_32], %105 {strides = array<i32>} : memref<8x128xf32, #tpu.memory_space<vmem>>, vector<8x128xf32>,
    %c0_33 = arith.constant 0 : index
    %c0_34 = arith.constant 0 : index
    %107 = vector.load %arg11[%c0_33, %c0_34] : memref<8x128xf32, #tpu.memory_space<vmem>>, vector<8x128xf32>
    tpu.vector_store %arg11[%c0_33, %c0_34], %59 {strides = array<i32>} : memref<8x128xf32, #tpu.memory_space<vmem>>, vector<8x128xf32>,
    %c0_35 = arith.constant 0 : index
    %c0_36 = arith.constant 0 : index
    %c0_37 = arith.constant 0 : index
    %108 = vector.load %arg8[%c0_35, %c0_36, %c0_37] : memref<1x8x128xf32, #tpu.memory_space<vmem>>, vector<1x8x128xf32>
    %109 = vector.shape_cast %108 : vector<1x8x128xf32> to vector<8x128xf32>
    %110 = vector.shape_cast %105 : vector<8x128xf32> to vector<1x8x128xf32>
    tpu.vector_store %arg8[%c0_35, %c0_36, %c0_37], %110 {strides = array<i32>} : memref<1x8x128xf32, #tpu.memory_space<vmem>>, vector<1x8x128xf32>,
    %c0_38 = arith.constant 0 : index
    %c0_39 = arith.constant 0 : index
    %c0_40 = arith.constant 0 : index
    %111 = vector.load %arg9[%c0_38, %c0_39, %c0_40] : memref<1x8x128xf32, #tpu.memory_space<vmem>>, vector<1x8x128xf32>
    %112 = vector.shape_cast %111 : vector<1x8x128xf32> to vector<8x128xf32>
    %113 = vector.shape_cast %59 : vector<8x128xf32> to vector<1x8x128xf32>
    tpu.vector_store %arg9[%c0_38, %c0_39, %c0_40], %113 {strides = array<i32>} : memref<1x8x128xf32, #tpu.memory_space<vmem>>, vector<1x8x128xf32>,
    return
  }
  func.func @transform_0(%arg0: i32, %arg1: i32) -> (i32, i32, i32) {
    %c0_i32 = arith.constant 0 : i32
    %c0_i32_0 = arith.constant 0 : i32
    return %arg1, %arg0, %c0_i32 : i32, i32, i32
  }
  func.func @transform_1(%arg0: i32, %arg1: i32) -> (i32, i32) {
    %c0_i32 = arith.constant 0 : i32
    %c0_i32_0 = arith.constant 0 : i32
    return %arg0, %c0_i32 : i32, i32
  }
  func.func @transform_2(%arg0: i32, %arg1: i32) -> (i32, i32) {
    %c0_i32 = arith.constant 0 : i32
    %c0_i32_0 = arith.constant 0 : i32
    return %arg0, %c0_i32 : i32, i32
  }
  func.func @transform_3(%arg0: i32, %arg1: i32) -> (i32, i32) {
    %c0_i32 = arith.constant 0 : i32
    %c0_i32_0 = arith.constant 0 : i32
    %c0_i32_1 = arith.constant 0 : i32
    return %c0_i32, %c0_i32_0 : i32, i32
  }
  func.func @transform_4(%arg0: i32, %arg1: i32) -> (i32, i32) {
    %c0_i32 = arith.constant 0 : i32
    %c0_i32_0 = arith.constant 0 : i32
    %c0_i32_1 = arith.constant 0 : i32
    return %c0_i32, %c0_i32_0 : i32, i32
  }
  func.func @transform_5(%arg0: i32, %arg1: i32) -> (i32, i32) {
    %c0_i32 = arith.constant 0 : i32
    %c0_i32_0 = arith.constant 0 : i32
    %c0_i32_1 = arith.constant 0 : i32
    return %c0_i32, %c0_i32_0 : i32, i32
  }
  func.func @transform_6(%arg0: i32, %arg1: i32) -> (i32, i32, i32) {
    %c0_i32 = arith.constant 0 : i32
    %c0_i32_0 = arith.constant 0 : i32
    return %arg1, %arg0, %c0_i32 : i32, i32, i32
  }
  func.func @transform_7(%arg0: i32, %arg1: i32) -> (i32, i32, i32) {
    %c0_i32 = arith.constant 0 : i32
    %c0_i32_0 = arith.constant 0 : i32
    return %arg1, %arg0, %c0_i32 : i32, i32, i32
  }
}

module attributes {stable_mosaic.version = 11 : i64} {
  func.func @_input_proj_ln_kernel(%arg0: i32, %arg1: memref<128x64xf32, #tpu.memory_space<vmem>>, %arg2: memref<64x512xf32, #tpu.memory_space<vmem>>, %arg3: memref<1x512xf32, #tpu.memory_space<vmem>>, %arg4: memref<1x512xf32, #tpu.memory_space<vmem>>, %arg5: memref<1x512xf32, #tpu.memory_space<vmem>>, %arg6: memref<128x512xf32, #tpu.memory_space<vmem>>) attributes {dimension_semantics = [#tpu.dimension_semantics<parallel>], iteration_bounds = array<i64: 1>, scalar_prefetch = 0 : i64, scratch_operands = 0 : i64, tpu.core_type = #tpu.core_type<tc>, window_params = [{transform_indices = @transform_0, window_bounds = array<i64: 128, 64>}, {pipeline_mode = #tpu.pipeline_mode<synchronous>, transform_indices = @transform_1, window_bounds = array<i64: 64, 512>}, {pipeline_mode = #tpu.pipeline_mode<synchronous>, transform_indices = @transform_2, window_bounds = array<i64: 1, 512>}, {pipeline_mode = #tpu.pipeline_mode<synchronous>, transform_indices = @transform_3, window_bounds = array<i64: 1, 512>}, {pipeline_mode = #tpu.pipeline_mode<synchronous>, transform_indices = @transform_4, window_bounds = array<i64: 1, 512>}, {transform_indices = @transform_5, window_bounds = array<i64: 128, 512>}]} {
    %c0 = arith.constant 0 : index
    %c0_0 = arith.constant 0 : index
    %0 = vector.load %arg1[%c0, %c0_0] : memref<128x64xf32, #tpu.memory_space<vmem>>, vector<128x64xf32>
    %c0_1 = arith.constant 0 : index
    %c0_2 = arith.constant 0 : index
    %1 = vector.load %arg2[%c0_1, %c0_2] : memref<64x512xf32, #tpu.memory_space<vmem>>, vector<64x512xf32>
    %cst = arith.constant dense<0.000000e+00> : vector<128x512xf32>
    %2 = tpu.matmul %0, %1, %cst {dimension_numbers = #tpu.dot_dimension_numbers<[1], [0], [0], [1], [0, 0, 1, 1], [], []>} : vector<128x64xf32>, vector<64x512xf32>, vector<128x512xf32> -> vector<128x512xf32>
    %c0_3 = arith.constant 0 : index
    %c0_4 = arith.constant 0 : index
    %3 = vector.load %arg3[%c0_3, %c0_4] : memref<1x512xf32, #tpu.memory_space<vmem>>, vector<1x512xf32>
    %4 = vector.broadcast %3 : vector<1x512xf32> to vector<128x512xf32>
    %5 = arith.addf %2, %4 : vector<128x512xf32>
    %c0_5 = arith.constant 0 : index
    %c0_6 = arith.constant 0 : index
    %6 = vector.load %arg4[%c0_5, %c0_6] : memref<1x512xf32, #tpu.memory_space<vmem>>, vector<1x512xf32>
    %c0_7 = arith.constant 0 : index
    %c0_8 = arith.constant 0 : index
    %7 = vector.load %arg5[%c0_7, %c0_8] : memref<1x512xf32, #tpu.memory_space<vmem>>, vector<1x512xf32>
    %cst_9 = arith.constant dense<0.000000e+00> : vector<128xf32>
    %8 = vector.multi_reduction <add>, %5, %cst_9 [1] : vector<128x512xf32> to vector<128xf32>
    %9 = vector.shape_cast %8 : vector<128xf32> to vector<128x1xf32>
    %cst_10 = arith.constant 5.120000e+02 : f32
    %10 = vector.broadcast %cst_10 : f32 to vector<128x1xf32>
    %11 = arith.divf %9, %10 : vector<128x1xf32>
    %12 = vector.broadcast %11 : vector<128x1xf32> to vector<128x512xf32>
    %13 = arith.subf %5, %12 : vector<128x512xf32>
    %14 = arith.mulf %13, %13 : vector<128x512xf32>
    %cst_11 = arith.constant dense<0.000000e+00> : vector<128xf32>
    %15 = vector.multi_reduction <add>, %14, %cst_11 [1] : vector<128x512xf32> to vector<128xf32>
    %16 = vector.shape_cast %15 : vector<128xf32> to vector<128x1xf32>
    %cst_12 = arith.constant 5.120000e+02 : f32
    %17 = vector.broadcast %cst_12 : f32 to vector<128x1xf32>
    %18 = arith.divf %16, %17 : vector<128x1xf32>
    %cst_13 = arith.constant 9.99999974E-6 : f32
    %19 = vector.broadcast %cst_13 : f32 to vector<128x1xf32>
    %20 = arith.addf %18, %19 : vector<128x1xf32>
    %21 = math.rsqrt %20 : vector<128x1xf32>
    %22 = vector.broadcast %21 : vector<128x1xf32> to vector<128x512xf32>
    %23 = arith.mulf %13, %22 : vector<128x512xf32>
    %24 = vector.broadcast %6 : vector<1x512xf32> to vector<128x512xf32>
    %25 = arith.mulf %23, %24 : vector<128x512xf32>
    %26 = vector.broadcast %7 : vector<1x512xf32> to vector<128x512xf32>
    %27 = arith.addf %25, %26 : vector<128x512xf32>
    %c0_14 = arith.constant 0 : index
    %c0_15 = arith.constant 0 : index
    %28 = vector.load %arg6[%c0_14, %c0_15] : memref<128x512xf32, #tpu.memory_space<vmem>>, vector<128x512xf32>
    tpu.vector_store %arg6[%c0_14, %c0_15], %27 {strides = array<i32>} : memref<128x512xf32, #tpu.memory_space<vmem>>, vector<128x512xf32>,
    return
  }
  func.func @transform_0(%arg0: i32) -> (i32, i32) {
    %c0_i32 = arith.constant 0 : i32
    %c0_i32_0 = arith.constant 0 : i32
    return %arg0, %c0_i32 : i32, i32
  }
  func.func @transform_1(%arg0: i32) -> (i32, i32) {
    %c0_i32 = arith.constant 0 : i32
    %c0_i32_0 = arith.constant 0 : i32
    %c0_i32_1 = arith.constant 0 : i32
    return %c0_i32, %c0_i32_0 : i32, i32
  }
  func.func @transform_2(%arg0: i32) -> (i32, i32) {
    %c0_i32 = arith.constant 0 : i32
    %c0_i32_0 = arith.constant 0 : i32
    %c0_i32_1 = arith.constant 0 : i32
    return %c0_i32, %c0_i32_0 : i32, i32
  }
  func.func @transform_3(%arg0: i32) -> (i32, i32) {
    %c0_i32 = arith.constant 0 : i32
    %c0_i32_0 = arith.constant 0 : i32
    %c0_i32_1 = arith.constant 0 : i32
    return %c0_i32, %c0_i32_0 : i32, i32
  }
  func.func @transform_4(%arg0: i32) -> (i32, i32) {
    %c0_i32 = arith.constant 0 : i32
    %c0_i32_0 = arith.constant 0 : i32
    %c0_i32_1 = arith.constant 0 : i32
    return %c0_i32, %c0_i32_0 : i32, i32
  }
  func.func @transform_5(%arg0: i32) -> (i32, i32) {
    %c0_i32 = arith.constant 0 : i32
    %c0_i32_0 = arith.constant 0 : i32
    return %arg0, %c0_i32 : i32, i32
  }
}

</mosaic_0001>

<llo_original>
// kernel: layer_norm_lstm.3
$region0: #{layer_norm_lstm.3}
  #allocation0 [shape = 'u32[]', space=smem, size = 0x4, offset = 0x4, fixed_abs, tag = 'smem constant byte address 0x4 - core index']
  #allocation1 [shape = 'u32[72,128]{1,0:T(1,128)}', space=vmem, size = 0x9000, scoped, tag = 'internal scratch']
  #allocation2 [shape = 'f32[8,128]{1,0:T(8,128)}', space=vmem, size = 0x1000, scoped, tag = 'scratch operand']
  #allocation3 [shape = 'f32[8,128]{1,0:T(8,128)}', space=vmem, size = 0x1000, scoped, tag = 'scratch operand']
  %s0 = inlined_call_operand.vmem [shape: f32[8,16,512], index: 0, kind: input, shape index: {}]
  %s1 = inlined_call_operand.vmem [shape: f32[16,128], index: 1, kind: input, shape index: {}]
  %s2 = inlined_call_operand.vmem [shape: f32[16,128], index: 2, kind: input, shape index: {}]
  %s3 = inlined_call_operand.hbm [shape: f32[128,512], index: 3, kind: input, shape index: {}]
  %s4 = inlined_call_operand.vmem [shape: f32[3,512], index: 4, kind: input, shape index: {}]
  %s5 = inlined_call_operand.vmem [shape: f32[4,128], index: 5, kind: input, shape index: {}]
  %s6 = inlined_call_operand.hbm [shape: f32[8,16,128], index: 6, kind: output, shape index: {0}]
  %s7 = inlined_call_operand.hbm [shape: f32[8,16,128], index: 7, kind: output, shape index: {1}]
  %8 = xla_tuple %s6, %s7
  %s9 = sld [smem:[#allocation0]]
  $region73: #{layer_norm_lstm.3} parent=0
    _
  %s11 = ssub.s32 1, %s9
  %s12 = scalar_select 0, %s11, %s9
  $region1: #{layer_norm_lstm.3} parent=0
    #allocation4 [shape = 'u8[262144]{0}', space=vmem, size = 0x40000, scoped, tag = 'input window, operand 3, single buffered']
    #allocation5 [shape = 's32[2]{0}', space=sflag, size = 0x8, scoped, tag = 'scoped memory for layer_norm_lstm.3']
    #allocation6 [shape = 's32[2]{0}', space=sflag, size = 0x8, scoped, tag = 'scoped memory for layer_norm_lstm.3']
    #allocation7 [shape = 'u8[8192]{0}', space=vmem, size = 0x2000, scoped, tag = 'output window, operand 0']
    #allocation8 [shape = 'u8[8192]{0}', space=vmem, size = 0x2000, scoped, tag = 'output window, operand 1']
    #allocation9 [shape = 's32[2]{0}', space=sflag, size = 0x8, scoped, tag = 'scoped memory for layer_norm_lstm.3']
    %13 = vsyncpa [#allocation5], 0
    %14 = vsyncpa [#allocation6], 0
    %s15 = scalar_lea.sflag [#allocation6], 1
    %16 = vsyncpa %s15, 0
    %17 = vsyncpa [#allocation9], 0
    %s18 = scalar_lea.sflag [#allocation9], 1
    %19 = vsyncpa %s18, 0
    loop: start=0, step=1, limit=18
    $region2: #{layer_norm_lstm.3} parent=1 // loop_pre_header
      _
    $region3: #{layer_norm_lstm.3} parent=1 // loop_header
      %s21 = sphi 0, %s25
      %p22 = scmp.ge.s32.totalorder %s21, 18
      %s28 = sphi 0, %s40
      %s29 = sphi 0, %s36
      %s30 = sphi 0, %s28
      %s31 = sphi 0, %s29
      %s32 = sphi 0, %s30
      %s33 = sphi 0, %s31
      %s45 = sphi 0, %s47
      %s48 = sphi 0, %s45
      %s49 = sphi 0, %s48
      %s65 = sphi 0, %s49
      %s71 = sphi 0, %s73
      %s74 = sphi 0, %s71
      %s75 = sphi 0, %s74
      %s91 = sphi 0, %s75
      %s97 = sphi 0, %s99
      %s100 = sphi 0, %s97
      %s101 = sphi 0, %s100
      %s117 = sphi 0, %s101
      %s121 = sphi 0, %s121
      %s123 = sphi 0, %s121
      %s124 = sphi 0, %s123
      %s138 = sphi 0, %s124
      %s142 = sphi 0, %s142
      %s144 = sphi 0, %s142
      %s145 = sphi 0, %s144
      %s159 = sphi 0, %s145
      %s163 = sphi 0, %s163
      %s165 = sphi 0, %s163
      %s166 = sphi 0, %s165
      %s180 = sphi 0, %s166
      %s188 = sphi 0, %s190
      %s191 = sphi 0, %s188
      %s192 = sphi 0, %s191
      %s208 = sphi 0, %s192
      %s216 = sphi 0, %s218
      %s219 = sphi 0, %s216
      %s220 = sphi 0, %s219
      %s236 = sphi 0, %s220
    $region4: #{layer_norm_lstm.3} parent=1 // loop_header_branch
      %24 = sbr.rel (%p22) target = $region8
    $region5: #{layer_norm_lstm.3} parent=1 // loop_body
      %s26 = ssub.s32 %s21, 1
      %s27 = ssub.s32 %s21, 2
      %s34 = sadd.s32 1, %s29
      %p35 = scmp.ge.s32.totalorder %s34, 8
      %s36 = scalar_select %p35, 0, %s34
      %s37 = sadd.s32 1, %s28
      %s38 = scalar_select %p35, %s37, %s28
      %p39 = scmp.ge.s32.totalorder %s38, 2
      %s40 = scalar_select %p39, 0, %s38
      %s41 = ssub.s32 %s29, %s36
      %s42 = ssub.s32 %s28, %s40
      %s43 = sor.u32 %s41, %s42
      %p44 = scmp.eq.s32.totalorder %s43, 0
      %s46 = sadd.s32 %s45, 1
      %s47 = scalar_select %p44, %s45, %s46
      %p50 = pneg %p44
      %p51 = scmp.eq.s32.totalorder %s21, 15
      %p52 = por %p50, %p51
      %p53 = scmp.ne.s32.totalorder %s45, %s48
      %p54 = scmp.eq.s32.totalorder %s21, 0
      %p55 = por %p53, %p54
      %p56 = scmp.ne.s32.totalorder %s45, %s48
      %p57 = scmp.eq.s32.totalorder %s26, 15
      %p58 = por %p56, %p57
      %p59 = scmp.ne.s32.totalorder %s48, %s49
      %p60 = scmp.eq.s32.totalorder %s26, 0
      %p61 = por %p59, %p60
      %p62 = scmp.ne.s32.totalorder %s48, %s49
      %p63 = scmp.eq.s32.totalorder %s27, 15
      %p64 = por %p62, %p63
      %p66 = scmp.ne.s32.totalorder %s49, %s65
      %p67 = scmp.eq.s32.totalorder %s27, 0
      %p68 = por %p66, %p67
      %s69 = ssub.s32 %s28, %s40
      %p70 = scmp.eq.s32.totalorder %s69, 0
      %s72 = sadd.s32 %s71, 1
      %s73 = scalar_select %p70, %s71, %s72
      %p76 = pneg %p70
      %p77 = scmp.eq.s32.totalorder %s21, 15
      %p78 = por %p76, %p77
      %p79 = scmp.ne.s32.totalorder %s71, %s74
      %p80 = scmp.eq.s32.totalorder %s21, 0
      %p81 = por %p79, %p80
      %p82 = scmp.ne.s32.totalorder %s71, %s74
      %p83 = scmp.eq.s32.totalorder %s26, 15
      %p84 = por %p82, %p83
      %p85 = scmp.ne.s32.totalorder %s74, %s75
      %p86 = scmp.eq.s32.totalorder %s26, 0
      %p87 = por %p85, %p86
      %p88 = scmp.ne.s32.totalorder %s74, %s75
      %p89 = scmp.eq.s32.totalorder %s27, 15
      %p90 = por %p88, %p89
      %p92 = scmp.ne.s32.totalorder %s75, %s91
      %p93 = scmp.eq.s32.totalorder %s27, 0
      %p94 = por %p92, %p93
      %s95 = ssub.s32 %s28, %s40
      %p96 = scmp.eq.s32.totalorder %s95, 0
      %s98 = sadd.s32 %s97, 1
      %s99 = scalar_select %p96, %s97, %s98
      %p102 = pneg %p96
      %p103 = scmp.eq.s32.totalorder %s21, 15
      %p104 = por %p102, %p103
      %p105 = scmp.ne.s32.totalorder %s97, %s100
      %p106 = scmp.eq.s32.totalorder %s21, 0
      %p107 = por %p105, %p106
      %p108 = scmp.ne.s32.totalorder %s97, %s100
      %p109 = scmp.eq.s32.totalorder %s26, 15
      %p110 = por %p108, %p109
      %p111 = scmp.ne.s32.totalorder %s100, %s101
      %p112 = scmp.eq.s32.totalorder %s26, 0
      %p113 = por %p111, %p112
      %p114 = scmp.ne.s32.totalorder %s100, %s101
      %p115 = scmp.eq.s32.totalorder %s27, 15
      %p116 = por %p114, %p115
      %p118 = scmp.ne.s32.totalorder %s101, %s117
      %p119 = scmp.eq.s32.totalorder %s27, 0
      %p120 = por %p118, %p119
      %s122 = sadd.s32 %s121, 1
      %p125 = scmp.eq.s32.totalorder %s21, 15
      %p126 = scmp.ne.s32.totalorder %s121, %s123
      %p127 = scmp.eq.s32.totalorder %s21, 0
      %p128 = por %p126, %p127
      %p129 = scmp.ne.s32.totalorder %s121, %s123
      %p130 = scmp.eq.s32.totalorder %s26, 15
      %p131 = por %p129, %p130
      %p132 = scmp.ne.s32.totalorder %s123, %s124
      %p133 = scmp.eq.s32.totalorder %s26, 0
      %p134 = por %p132, %p133
      %p135 = scmp.ne.s32.totalorder %s123, %s124
      %p136 = scmp.eq.s32.totalorder %s27, 15
      %p137 = por %p135, %p136
      %p139 = scmp.ne.s32.totalorder %s124, %s138
      %p140 = scmp.eq.s32.totalorder %s27, 0
      %p141 = por %p139, %p140
      %s143 = sadd.s32 %s142, 1
      %p146 = scmp.eq.s32.totalorder %s21, 15
      %p147 = scmp.ne.s32.totalorder %s142, %s144
      %p148 = scmp.eq.s32.totalorder %s21, 0
      %p149 = por %p147, %p148
      %p150 = scmp.ne.s32.totalorder %s142, %s144
      %p151 = scmp.eq.s32.totalorder %s26, 15
      %p152 = por %p150, %p151
      %p153 = scmp.ne.s32.totalorder %s144, %s145
      %p154 = scmp.eq.s32.totalorder %s26, 0
      %p155 = por %p153, %p154
      %p156 = scmp.ne.s32.totalorder %s144, %s145
      %p157 = scmp.eq.s32.totalorder %s27, 15
      %p158 = por %p156, %p157
      %p160 = scmp.ne.s32.totalorder %s145, %s159
      %p161 = scmp.eq.s32.totalorder %s27, 0
      %p162 = por %p160, %p161
      %s164 = sadd.s32 %s163, 1
      %p167 = scmp.eq.s32.totalorder %s21, 15
      %p168 = scmp.ne.s32.totalorder %s163, %s165
      %p169 = scmp.eq.s32.totalorder %s21, 0
      %p170 = por %p168, %p169
      %p171 = scmp.ne.s32.totalorder %s163, %s165
      %p172 = scmp.eq.s32.totalorder %s26, 15
      %p173 = por %p171, %p172
      %p174 = scmp.ne.s32.totalorder %s165, %s166
      %p175 = scmp.eq.s32.totalorder %s26, 0
      %p176 = por %p174, %p175
      %p177 = scmp.ne.s32.totalorder %s165, %s166
      %p178 = scmp.eq.s32.totalorder %s27, 15
      %p179 = por %p177, %p178
      %p181 = scmp.ne.s32.totalorder %s166, %s180
      %p182 = scmp.eq.s32.totalorder %s27, 0
      %p183 = por %p181, %p182
      %s184 = ssub.s32 %s29, %s36
      %s185 = ssub.s32 %s28, %s40
      %s186 = sor.u32 %s184, %s185
      %p187 = scmp.eq.s32.totalorder %s186, 0
      %s189 = sadd.s32 %s188, 1
      %s190 = scalar_select %p187, %s188, %s189
      %p193 = pneg %p187
      %p194 = scmp.eq.s32.totalorder %s21, 15
      %p195 = por %p193, %p194
      %p196 = scmp.ne.s32.totalorder %s188, %s191
      %p197 = scmp.eq.s32.totalorder %s21, 0
      %p198 = por %p196, %p197
      %p199 = scmp.ne.s32.totalorder %s188, %s191
      %p200 = scmp.eq.s32.totalorder %s26, 15
      %p201 = por %p199, %p200
      %p202 = scmp.ne.s32.totalorder %s191, %s192
      %p203 = scmp.eq.s32.totalorder %s26, 0
      %p204 = por %p202, %p203
      %p205 = scmp.ne.s32.totalorder %s191, %s192
      %p206 = scmp.eq.s32.totalorder %s27, 15
      %p207 = por %p205, %p206
      %p209 = scmp.ne.s32.totalorder %s192, %s208
      %p210 = scmp.eq.s32.totalorder %s27, 0
      %p211 = por %p209, %p210
      %s212 = ssub.s32 %s29, %s36
      %s213 = ssub.s32 %s28, %s40
      %s214 = sor.u32 %s212, %s213
      %p215 = scmp.eq.s32.totalorder %s214, 0
      %s217 = sadd.s32 %s216, 1
      %s218 = scalar_select %p215, %s216, %s217
      %p221 = pneg %p215
      %p222 = scmp.eq.s32.totalorder %s21, 15
      %p223 = por %p221, %p222
      %p224 = scmp.ne.s32.totalorder %s216, %s219
      %p225 = scmp.eq.s32.totalorder %s21, 0
      %p226 = por %p224, %p225
      %p227 = scmp.ne.s32.totalorder %s216, %s219
      %p228 = scmp.eq.s32.totalorder %s26, 15
      %p229 = por %p227, %p228
      %p230 = scmp.ne.s32.totalorder %s219, %s220
      %p231 = scmp.eq.s32.totalorder %s26, 0
      %p232 = por %p230, %p231
      %p233 = scmp.ne.s32.totalorder %s219, %s220
      %p234 = scmp.eq.s32.totalorder %s27, 15
      %p235 = por %p233, %p234
      %p237 = scmp.ne.s32.totalorder %s220, %s236
      %p238 = scmp.eq.s32.totalorder %s27, 0
      %p239 = por %p237, %p238
      %p240 = scmp.le.s32.totalorder 1, %s21
      %p241 = scmp.lt.s32.totalorder %s21, 17
      %p242 = pnand %p240, %p241
      %p243 = pneg %p242
      // Predicated region
      $region9: #{layer_norm_lstm.3} parent=5 // pred_check
        _
      $region10: #{layer_norm_lstm.3} parent=5 // pred_check_branch
        %245 = sbr.rel (%p242) target = $region12
      $region11: #{layer_norm_lstm.3} parent=5 // pred_region
        %s246 = ssub.s32 %s21, 1
        // Predicated region
        $region13: #{layer_norm_lstm.3} parent=11 // pred_check
          %p247 = pneg %p134
        $region14: #{layer_norm_lstm.3} parent=11 // pred_check_branch
          %249 = sbr.rel (%p247) target = $region16
        $region15: #{layer_norm_lstm.3} parent=11 // pred_region
          %251 = vsyncadd [#allocation5], 0
          %s252 = sshll.u32 %s3, 4
          %s253 = int_to_ptr.hbm [resolvable:$true] %s252
          %s254 = sshll.u32 [#allocation4], 4
          %s255 = int_to_ptr.vmem [resolvable:$true] %s254
          %260 = dma.hbm_to_vmem [thread:$0]  %s253, 8192, %s255, [#allocation5], 512, 512, 32
        $region16: #{layer_norm_lstm.3} parent=11 // pred_fallthru
          _
        // Predicated region
        $region17: #{layer_norm_lstm.3} parent=11 // pred_check
          %p261 = pneg %p155
        $region18: #{layer_norm_lstm.3} parent=11 // pred_check_branch
          %263 = sbr.rel (%p261) target = $region20
        $region19: #{layer_norm_lstm.3} parent=11 // pred_region
          _
        $region20: #{layer_norm_lstm.3} parent=11 // pred_fallthru
          _
        // Predicated region
        $region21: #{layer_norm_lstm.3} parent=11 // pred_check
          %p264 = pneg %p176
        $region22: #{layer_norm_lstm.3} parent=11 // pred_check_branch
          %266 = sbr.rel (%p264) target = $region24
        $region23: #{layer_norm_lstm.3} parent=11 // pred_region
          _
        $region24: #{layer_norm_lstm.3} parent=11 // pred_fallthru
          _
      $region12: #{layer_norm_lstm.3} parent=5 // pred_fallthru
        _
      %p267 = scmp.lt.s32.totalorder %s21, 16
      // Predicated region
      $region25: #{layer_norm_lstm.3} parent=5 // pred_check
        %p268 = pneg %p267
      $region26: #{layer_norm_lstm.3} parent=5 // pred_check_branch
        %270 = sbr.rel (%p268) target = $region28
      $region27: #{layer_norm_lstm.3} parent=5 // pred_region
        // Predicated region
        $region29: #{layer_norm_lstm.3} parent=27 // pred_check
          %p271 = pneg %p55
        $region30: #{layer_norm_lstm.3} parent=27 // pred_check_branch
          %273 = sbr.rel (%p271) target = $region32
        $region31: #{layer_norm_lstm.3} parent=27 // pred_region
          %p274 = scmp.lt.s32.totalorder %s29, 7
          %s275 = scalar_select %p274, %s29, 7
          %p276 = scmp.lt.s32.totalorder %s28, 1
          %s277 = scalar_select %p276, %s28, 1
          %s278 = smul.addr %s277, 4
          %s279 = smul.addr %s275, 8
          %s280 = sadd.s32 %s278, %s279
          %s281 = smul.addr %s280, 8
          %s282 = scalar_lea.vmem %s0, %s281
        $region32: #{layer_norm_lstm.3} parent=27 // pred_fallthru
          _
        // Predicated region
        $region33: #{layer_norm_lstm.3} parent=27 // pred_check
          %p283 = pneg %p81
        $region34: #{layer_norm_lstm.3} parent=27 // pred_check_branch
          %285 = sbr.rel (%p283) target = $region36
        $region35: #{layer_norm_lstm.3} parent=27 // pred_region
          %p286 = scmp.lt.s32.totalorder %s28, 1
          %s287 = scalar_select %p286, %s28, 1
          %s288 = smul.addr %s287, 8
          %s289 = scalar_lea.vmem %s1, %s288
        $region36: #{layer_norm_lstm.3} parent=27 // pred_fallthru
          _
        // Predicated region
        $region37: #{layer_norm_lstm.3} parent=27 // pred_check
          %p290 = pneg %p107
        $region38: #{layer_norm_lstm.3} parent=27 // pred_check_branch
          %292 = sbr.rel (%p290) target = $region40
        $region39: #{layer_norm_lstm.3} parent=27 // pred_region
          %p293 = scmp.lt.s32.totalorder %s28, 1
          %s294 = scalar_select %p293, %s28, 1
          %s295 = smul.addr %s294, 8
          %s296 = scalar_lea.vmem %s2, %s295
        $region40: #{layer_norm_lstm.3} parent=27 // pred_fallthru
          _
      $region28: #{layer_norm_lstm.3} parent=5 // pred_fallthru
        _
      %p297 = scmp.le.s32.totalorder 1, %s21
      %p298 = scmp.lt.s32.totalorder %s21, 17
      %p299 = pnand %p297, %p298
      %p300 = pneg %p299
      // Predicated region
      $region41: #{layer_norm_lstm.3} parent=5 // pred_check
        _
      $region42: #{layer_norm_lstm.3} parent=5 // pred_check_branch
        %302 = sbr.rel (%p299) target = $region44
      $region43: #{layer_norm_lstm.3} parent=5 // pred_region
        %s303 = ssub.s32 %s21, 1
        // Predicated region
        $region45: #{layer_norm_lstm.3} parent=43 // pred_check
          %p304 = pneg %p134
        $region46: #{layer_norm_lstm.3} parent=43 // pred_check_branch
          %306 = sbr.rel (%p304) target = $region48
        $region47: #{layer_norm_lstm.3} parent=43 // pred_region
          %308 = dma.done [#allocation5], 8192
        $region48: #{layer_norm_lstm.3} parent=43 // pred_fallthru
          _
        %p309 = scmp.lt.s32.totalorder %s31, 7
        %s310 = scalar_select %p309, %s31, 7
        %p311 = scmp.lt.s32.totalorder %s30, 1
        %s312 = scalar_select %p311, %s30, 1
        %s313 = smul.addr %s312, 4
        %s314 = smul.addr %s310, 8
        %s315 = sadd.s32 %s313, %s314
        %s316 = smul.addr %s315, 8
        %s317 = scalar_lea.vmem %s0, %s316
        %p318 = pneg %p61
        %p319 = pneg %p58
        %p320 = scmp.lt.s32.totalorder %s30, 1
        %s321 = scalar_select %p320, %s30, 1
        %s322 = smul.addr %s321, 8
        %s323 = scalar_lea.vmem %s1, %s322
        %p324 = pneg %p87
        %p325 = pneg %p84
        %p326 = scmp.lt.s32.totalorder %s30, 1
        %s327 = scalar_select %p326, %s30, 1
        %s328 = smul.addr %s327, 8
        %s329 = scalar_lea.vmem %s2, %s328
        %p330 = pneg %p113
        %p331 = pneg %p110
        %p332 = pneg %p134
        %p333 = pneg %p131
        %p334 = pneg %p155
        %p335 = pneg %p152
        %p336 = pneg %p176
        %p337 = pneg %p173
        %p338 = pneg %p204
        %p339 = pneg %p201
        %s340 = sand.u32 %s191, 1
        %s341 = scalar_lea.sflag [#allocation6], %s340
        %s342 = sand.u32 %s191, 1
        %s343 = smul.addr %s342, 8
        %s344 = scalar_lea.vmem [#allocation7], %s343
        %p345 = pneg %p232
        %p346 = pneg %p229
        %s347 = sand.u32 %s219, 1
        %s348 = scalar_lea.sflag [#allocation9], %s347
        %s349 = sand.u32 %s219, 1
        %s350 = smul.addr %s349, 8
        %s351 = scalar_lea.vmem [#allocation8], %s350
        %p352 = scmp.lt.s32.totalorder %s31, 7
        %s353 = scalar_select %p352, %s31, 7
        %p354 = scmp.lt.s32.totalorder %s30, 1
        %s355 = scalar_select %p354, %s30, 1
        %s356 = smul.addr %s355, 4
        %s357 = smul.addr %s353, 8
        %s358 = sadd.s32 %s356, %s357
        %s359 = smul.addr %s358, 8
        %s360 = scalar_lea.vmem %s0, %s359
        %p361 = scmp.lt.s32.totalorder %s30, 1
        %s362 = scalar_select %p361, %s30, 1
        %s363 = smul.addr %s362, 8
        %s364 = scalar_lea.vmem %s1, %s363
        %p365 = scmp.lt.s32.totalorder %s30, 1
        %s366 = scalar_select %p365, %s30, 1
        %s367 = smul.addr %s366, 8
        %s368 = scalar_lea.vmem %s2, %s367
        %p369 = scmp.eq.s32.totalorder %s31, 0
        // Predicated region
        $region49: #{layer_norm_lstm.3} parent=43 // pred_check
          %p370 = pneg %p369
        $region50: #{layer_norm_lstm.3} parent=43 // pred_check_branch
          %372 = sbr.rel (%p370) target = $region52
        $region51: #{layer_norm_lstm.3} parent=43 // pred_region
          %v373 = vld [vmem:[%s364] sm:$0xff]
          %374 = vst [vmem:[#allocation2] sm:$0xff] %v373
          %v375 = vld [vmem:[%s368] sm:$0xff]
          %376 = vst [vmem:[#allocation3] sm:$0xff] %v375
        $region52: #{layer_norm_lstm.3} parent=43 // pred_fallthru
          _
        %v377 = vld [vmem:[#allocation2] sm:$0xff]
        %v378 = vld [vmem:[#allocation3] sm:$0xff]
        %v379 = vld [vmem:[%s4] sm:$0x77]
        %v380 = vld [vmem:[%s4 + $0x8] sm:$0x77]
        %v381 = vld [vmem:[%s5] sm:$0xf]
        %v382 = vld [vmem:[#allocation4] sm:$0xff]
        %v383 = vld [vmem:[#allocation4 + $0x8] sm:$0xff]
        %v384 = vld [vmem:[#allocation4 + $0x10] sm:$0xff]
        %v385 = vld [vmem:[#allocation4 + $0x18] sm:$0xff]
        %v386 = vld [vmem:[#allocation4 + $0x20] sm:$0xff]
        %v387 = vld [vmem:[#allocation4 + $0x28] sm:$0xff]
        %v388 = vld [vmem:[#allocation4 + $0x30] sm:$0xff]
        %v389 = vld [vmem:[#allocation4 + $0x38] sm:$0xff]
        %v390 = vld [vmem:[#allocation4 + $0x40] sm:$0xff]
        %v391 = vld [vmem:[#allocation4 + $0x48] sm:$0xff]
        %v392 = vld [vmem:[#allocation4 + $0x50] sm:$0xff]
        %v393 = vld [vmem:[#allocation4 + $0x58] sm:$0xff]
        %v394 = vld [vmem:[#allocation4 + $0x60] sm:$0xff]
        %v395 = vld [vmem:[#allocation4 + $0x68] sm:$0xff]
        %v396 = vld [vmem:[#allocation4 + $0x70] sm:$0xff]
        %v397 = vld [vmem:[#allocation4 + $0x78] sm:$0xff]
        %v398 = vld [vmem:[#allocation4 + $0x80] sm:$0xff]
        %v399 = vld [vmem:[#allocation4 + $0x88] sm:$0xff]
        %v400 = vld [vmem:[#allocation4 + $0x90] sm:$0xff]
        %v401 = vld [vmem:[#allocation4 + $0x98] sm:$0xff]
        %v402 = vld [vmem:[#allocation4 + $0xa0] sm:$0xff]
        %v403 = vld [vmem:[#allocation4 + $0xa8] sm:$0xff]
        %v404 = vld [vmem:[#allocation4 + $0xb0] sm:$0xff]
        %v405 = vld [vmem:[#allocation4 + $0xb8] sm:$0xff]
        %v406 = vld [vmem:[#allocation4 + $0xc0] sm:$0xff]
        %v407 = vld [vmem:[#allocation4 + $0xc8] sm:$0xff]
        %v408 = vld [vmem:[#allocation4 + $0xd0] sm:$0xff]
        %v409 = vld [vmem:[#allocation4 + $0xd8] sm:$0xff]
        %v410 = vld [vmem:[#allocation4 + $0xe0] sm:$0xff]
        %v411 = vld [vmem:[#allocation4 + $0xe8] sm:$0xff]
        %v412 = vld [vmem:[#allocation4 + $0xf0] sm:$0xff]
        %v413 = vld [vmem:[#allocation4 + $0xf8] sm:$0xff]
        %v414 = vld [vmem:[#allocation4 + $0x100] sm:$0xff]
        %v415 = vld [vmem:[#allocation4 + $0x108] sm:$0xff]
        %v416 = vld [vmem:[#allocation4 + $0x110] sm:$0xff]
        %v417 = vld [vmem:[#allocation4 + $0x118] sm:$0xff]
        %v418 = vld [vmem:[#allocation4 + $0x120] sm:$0xff]
        %v419 = vld [vmem:[#allocation4 + $0x128] sm:$0xff]
        %v420 = vld [vmem:[#allocation4 + $0x130] sm:$0xff]
        %v421 = vld [vmem:[#allocation4 + $0x138] sm:$0xff]
        %v422 = vld [vmem:[#allocation4 + $0x140] sm:$0xff]
        %v423 = vld [vmem:[#allocation4 + $0x148] sm:$0xff]
        %v424 = vld [vmem:[#allocation4 + $0x150] sm:$0xff]
        %v425 = vld [vmem:[#allocation4 + $0x158] sm:$0xff]
        %v426 = vld [vmem:[#allocation4 + $0x160] sm:$0xff]
        %v427 = vld [vmem:[#allocation4 + $0x168] sm:$0xff]
        %v428 = vld [vmem:[#allocation4 + $0x170] sm:$0xff]
        %v429 = vld [vmem:[#allocation4 + $0x178] sm:$0xff]
        %v430 = vld [vmem:[#allocation4 + $0x180] sm:$0xff]
        %v431 = vld [vmem:[#allocation4 + $0x188] sm:$0xff]
        %v432 = vld [vmem:[#allocation4 + $0x190] sm:$0xff]
        %v433 = vld [vmem:[#allocation4 + $0x198] sm:$0xff]
        %v434 = vld [vmem:[#allocation4 + $0x1a0] sm:$0xff]
        %v435 = vld [vmem:[#allocation4 + $0x1a8] sm:$0xff]
        %v436 = vld [vmem:[#allocation4 + $0x1b0] sm:$0xff]
        %v437 = vld [vmem:[#allocation4 + $0x1b8] sm:$0xff]
        %v438 = vld [vmem:[#allocation4 + $0x1c0] sm:$0xff]
        %v439 = vld [vmem:[#allocation4 + $0x1c8] sm:$0xff]
        %v440 = vld [vmem:[#allocation4 + $0x1d0] sm:$0xff]
        %v441 = vld [vmem:[#allocation4 + $0x1d8] sm:$0xff]
        %v442 = vld [vmem:[#allocation4 + $0x1e0] sm:$0xff]
        %v443 = vld [vmem:[#allocation4 + $0x1e8] sm:$0xff]
        %v444 = vld [vmem:[#allocation4 + $0x1f0] sm:$0xff]
        %v445 = vld [vmem:[#allocation4 + $0x1f8] sm:$0xff]
        %v448 = vperm.slane %v379, 0
        %v449 = vperm.slane %v379, 4
        %v450 = vperm.slane %v380, 0
        %v451 = vperm.slane %v380, 4
        %v456 = vperm.slane %v448, 0
        %v457 = vperm.slane %v449, 0
        %v458 = vperm.slane %v450, 0
        %v459 = vperm.slane %v451, 0
        %460 = vmatpush.msra.mxu0 %v442
        %461 = vmatpush.msra.mxu0 %v438
        %462 = vmatpush.msra.mxu0 %v434
        %463 = vmatpush.msra.mxu0 %v430
        %464 = vmatpush.msra.mxu0 %v426
        %465 = vmatpush.msra.mxu0 %v422
        %466 = vmatpush.msra.mxu0 %v418
        %467 = vmatpush.msra.mxu0 %v414
        %468 = vmatpush.msra.mxu0 %v410
        %469 = vmatpush.msra.mxu0 %v406
        %470 = vmatpush.msra.mxu0 %v402
        %471 = vmatpush.msra.mxu0 %v398
        %472 = vmatpush.msra.mxu0 %v394
        %473 = vmatpush.msra.mxu0 %v390
        %474 = vmatpush.msra.mxu0 %v386
        %475 = vmatpush.msra.mxu0 %v382
        %476 = vmatmul.f32.gmra.mxu0 %v377
        %v477 = vpop.f32.mrf.mxu0
        %v478 = vadd.f32 %v456, %v477
        %479 = vdwg.mxu0
        %480 = vmatpush.msra.mxu0 %v443
        %481 = vmatpush.msra.mxu0 %v439
        %482 = vmatpush.msra.mxu0 %v435
        %483 = vmatpush.msra.mxu0 %v431
        %484 = vmatpush.msra.mxu0 %v427
        %485 = vmatpush.msra.mxu0 %v423
        %486 = vmatpush.msra.mxu0 %v419
        %487 = vmatpush.msra.mxu0 %v415
        %488 = vmatpush.msra.mxu0 %v411
        %489 = vmatpush.msra.mxu0 %v407
        %490 = vmatpush.msra.mxu0 %v403
        %491 = vmatpush.msra.mxu0 %v399
        %492 = vmatpush.msra.mxu0 %v395
        %493 = vmatpush.msra.mxu0 %v391
        %494 = vmatpush.msra.mxu0 %v387
        %495 = vmatpush.msra.mxu0 %v383
        %496 = vmatmul.f32.gmra.mxu0 %v377
        %v497 = vpop.f32.mrf.mxu0
        %v498 = vadd.f32 %v457, %v497
        %499 = vdwg.mxu0
        %500 = vmatpush.msra.mxu0 %v444
        %501 = vmatpush.msra.mxu0 %v440
        %502 = vmatpush.msra.mxu0 %v436
        %503 = vmatpush.msra.mxu0 %v432
        %504 = vmatpush.msra.mxu0 %v428
        %505 = vmatpush.msra.mxu0 %v424
        %506 = vmatpush.msra.mxu0 %v420
        %507 = vmatpush.msra.mxu0 %v416
        %508 = vmatpush.msra.mxu0 %v412
        %509 = vmatpush.msra.mxu0 %v408
        %510 = vmatpush.msra.mxu0 %v404
        %511 = vmatpush.msra.mxu0 %v400
        %512 = vmatpush.msra.mxu0 %v396
        %513 = vmatpush.msra.mxu0 %v392
        %514 = vmatpush.msra.mxu0 %v388
        %515 = vmatpush.msra.mxu0 %v384
        %516 = vmatmul.f32.gmra.mxu0 %v377
        %v517 = vpop.f32.mrf.mxu0
        %v518 = vadd.f32 %v458, %v517
        %519 = vdwg.mxu0
        %520 = vmatpush.msra.mxu0 %v445
        %521 = vmatpush.msra.mxu0 %v441
        %522 = vmatpush.msra.mxu0 %v437
        %523 = vmatpush.msra.mxu0 %v433
        %524 = vmatpush.msra.mxu0 %v429
        %525 = vmatpush.msra.mxu0 %v425
        %526 = vmatpush.msra.mxu0 %v421
        %527 = vmatpush.msra.mxu0 %v417
        %528 = vmatpush.msra.mxu0 %v413
        %529 = vmatpush.msra.mxu0 %v409
        %530 = vmatpush.msra.mxu0 %v405
        %531 = vmatpush.msra.mxu0 %v401
        %532 = vmatpush.msra.mxu0 %v397
        %533 = vmatpush.msra.mxu0 %v393
        %534 = vmatpush.msra.mxu0 %v389
        %535 = vmatpush.msra.mxu0 %v385
        %536 = vmatmul.f32.gmra.mxu0 %v377
        %v537 = vpop.f32.mrf.mxu0
        %v538 = vadd.f32 %v459, %v537
        %539 = vdwg.mxu0
        %v540 = vld [vmem:[%s360] sm:$0xff]
        %v541 = vld [vmem:[%s360 + $0x8] sm:$0xff]
        %v542 = vld [vmem:[%s360 + $0x10] sm:$0xff]
        %v543 = vld [vmem:[%s360 + $0x18] sm:$0xff]
        %v544 = vadd.f32 %v478, %v498
        %v545 = vadd.f32 %v544, %v518
        %v546 = vadd.f32 %v545, %v538
        %547 = vadd.xlane.f32.xlu0 %v546
        %v548 = vpop.xlane.xlu0 %547
        %v549 = vrcp.pop 512.0
        %v550 = vmul.f32 512.0, %v549
        %v551 = vsub.f32 1.0, %v550
        %v552 = vmul.f32 %v549, %v551
        %v553 = vadd.f32 %v549, %v552
        %vm554 = vweird.f32 %v549
        %v555 = vsel %vm554, %v549, %v553
        %v556 = vmul.f32 %v548, %v555
        %v557 = vsub.f32 %v478, %v556
        %v558 = vsub.f32 %v498, %v556
        %v559 = vsub.f32 %v518, %v556
        %v560 = vsub.f32 %v538, %v556
        %v561 = vmul.f32 %v557, %v557
        %v562 = vmul.f32 %v558, %v558
        %v563 = vmul.f32 %v559, %v559
        %v564 = vmul.f32 %v560, %v560
        %v565 = vadd.f32 %v561, %v562
        %v566 = vadd.f32 %v565, %v563
        %v567 = vadd.f32 %v566, %v564
        %568 = vadd.xlane.f32.xlu0 %v567
        %v569 = vpop.xlane.xlu0 %568
        %v570 = vmul.f32 %v569, %v555
        %v571 = vadd.f32 %v570, 1e-05
        %v572 = vrsqrt.pop %v571
        %v573 = vmul.f32 %v572, %v571
        %v574 = vmul.f32 %v573, %v572
        %v575 = vmul.f32 0.5, %v574
        %v576 = vsub.f32 1.5, %v575
        %v577 = vmul.f32 %v572, %v576
        %vm578 = vweird.f32 %v571
        %vm579 = vweird.f32 %v572
        %vm580 = vmor %vm578, %vm579
        %v581 = vsel %vm580, %v572, %v577
        %v582 = vmul.f32 %v557, %v581
        %v583 = vmul.f32 %v558, %v581
        %v584 = vmul.f32 %v559, %v581
        %v585 = vmul.f32 %v560, %v581
        %v586 = vperm.slane %v379, 1
        %v587 = vperm.slane %v379, 5
        %v588 = vperm.slane %v380, 1
        %v589 = vperm.slane %v380, 5
        %v594 = vperm.slane %v586, 1
        %v595 = vperm.slane %v587, 1
        %v596 = vperm.slane %v588, 1
        %v597 = vperm.slane %v589, 1
        %v598 = vmul.f32 %v582, %v594
        %v599 = vmul.f32 %v583, %v595
        %v600 = vmul.f32 %v584, %v596
        %v601 = vmul.f32 %v585, %v597
        %v602 = vperm.slane %v379, 2
        %v603 = vperm.slane %v379, 6
        %v604 = vperm.slane %v380, 2
        %v605 = vperm.slane %v380, 6
        %v610 = vperm.slane %v602, 2
        %v611 = vperm.slane %v603, 2
        %v612 = vperm.slane %v604, 2
        %v613 = vperm.slane %v605, 2
        %v614 = vadd.f32 %v598, %v610
        %v615 = vadd.f32 %v599, %v611
        %v616 = vadd.f32 %v600, %v612
        %v617 = vadd.f32 %v601, %v613
        %v618 = vadd.f32 %v540, %v614
        %v619 = vadd.f32 %v541, %v615
        %v620 = vadd.f32 %v542, %v616
        %v621 = vadd.f32 %v543, %v617
        %v622 = vxor.u32 %v618, 2147483648
        %v623 = vmul.f32 %v622, 1.442695
        %v624 = vpow.pop %v623
        %v625 = vadd.f32 %v624, 1.0
        %v626 = vrcp.pop %v625
        %v627 = vmul.f32 %v625, %v626
        %v628 = vsub.f32 1.0, %v627
        %v629 = vmul.f32 %v626, %v628
        %v630 = vadd.f32 %v626, %v629
        %vm631 = vweird.f32 %v625
        %vm632 = vweird.f32 %v626
        %vm633 = vmor %vm631, %vm632
        %v634 = vsel %vm633, %v626, %v630
        %v635 = vand.u32 2147483647, %v625
        %vm636 = vcmp.eq.f32.partialorder %v635, 8.507059e+37
        %v637 = vand.u32 %v625, 2147483648
        %v638 = vor.u32 1.1754944e-38, %v637
        %v639 = vsel %vm636, %v638, %v634
        %v640 = vmul.f32 1.0, %v639
        %v641 = vxor.u32 %v619, 2147483648
        %v642 = vmul.f32 %v641, 1.442695
        %v643 = vpow.pop %v642
        %v644 = vadd.f32 %v643, 1.0
        %v645 = vrcp.pop %v644
        %v646 = vmul.f32 %v644, %v645
        %v647 = vsub.f32 1.0, %v646
        %v648 = vmul.f32 %v645, %v647
        %v649 = vadd.f32 %v645, %v648
        %vm650 = vweird.f32 %v644
        %vm651 = vweird.f32 %v645
        %vm652 = vmor %vm650, %vm651
        %v653 = vsel %vm652, %v645, %v649
        %v654 = vand.u32 2147483647, %v644
        %vm655 = vcmp.eq.f32.partialorder %v654, 8.507059e+37
        %v656 = vand.u32 %v644, 2147483648
        %v657 = vor.u32 1.1754944e-38, %v656
        %v658 = vsel %vm655, %v657, %v653
        %v659 = vmul.f32 1.0, %v658
        %v660 = vtanh.pop %v620
        %v661 = vxor.u32 %v621, 2147483648
        %v662 = vmul.f32 %v661, 1.442695
        %v663 = vpow.pop %v662
        %v664 = vadd.f32 %v663, 1.0
        %v665 = vrcp.pop %v664
        %v666 = vmul.f32 %v664, %v665
        %v667 = vsub.f32 1.0, %v666
        %v668 = vmul.f32 %v665, %v667
        %v669 = vadd.f32 %v665, %v668
        %vm670 = vweird.f32 %v664
        %vm671 = vweird.f32 %v665
        %vm672 = vmor %vm670, %vm671
        %v673 = vsel %vm672, %v665, %v669
        %v674 = vand.u32 2147483647, %v664
        %vm675 = vcmp.eq.f32.partialorder %v674, 8.507059e+37
        %v676 = vand.u32 %v664, 2147483648
        %v677 = vor.u32 1.1754944e-38, %v676
        %v678 = vsel %vm675, %v677, %v673
        %v679 = vmul.f32 1.0, %v678
        %v680 = vmul.f32 %v659, %v378
        %v681 = vmul.f32 %v640, %v660
        %v682 = vadd.f32 %v680, %v681
        %683 = vadd.xlane.f32.xlu0 %v682
        %v684 = vpop.xlane.xlu0 %683
        %v685 = vrcp.pop 128.0
        %v686 = vmul.f32 128.0, %v685
        %v687 = vsub.f32 1.0, %v686
        %v688 = vmul.f32 %v685, %v687
        %v689 = vadd.f32 %v685, %v688
        %vm690 = vweird.f32 %v685
        %v691 = vsel %vm690, %v685, %v689
        %v692 = vmul.f32 %v684, %v691
        %v693 = vsub.f32 %v682, %v692
        %v694 = vmul.f32 %v693, %v693
        %695 = vadd.xlane.f32.xlu0 %v694
        %v696 = vpop.xlane.xlu0 %695
        %v697 = vmul.f32 %v696, %v691
        %v698 = vadd.f32 %v697, 1e-05
        %v699 = vrsqrt.pop %v698
        %v700 = vmul.f32 %v699, %v698
        %v701 = vmul.f32 %v700, %v699
        %v702 = vmul.f32 0.5, %v701
        %v703 = vsub.f32 1.5, %v702
        %v704 = vmul.f32 %v699, %v703
        %vm705 = vweird.f32 %v698
        %vm706 = vweird.f32 %v699
        %vm707 = vmor %vm705, %vm706
        %v708 = vsel %vm707, %v699, %v704
        %v709 = vmul.f32 %v693, %v708
        %v710 = vperm.slane %v381, 0
        %v711 = vmul.f32 %v709, %v710
        %v712 = vperm.slane %v381, 1
        %v713 = vadd.f32 %v711, %v712
        %v714 = vtanh.pop %v713
        %v715 = vmul.f32 %v679, %v714
        %716 = vadd.xlane.f32.xlu0 %v715
        %v717 = vpop.xlane.xlu0 %716
        %v718 = vmul.f32 %v717, %v691
        %v719 = vsub.f32 %v715, %v718
        %v720 = vmul.f32 %v719, %v719
        %721 = vadd.xlane.f32.xlu0 %v720
        %v722 = vpop.xlane.xlu0 %721
        %v723 = vmul.f32 %v722, %v691
        %v724 = vadd.f32 %v723, 1e-05
        %v725 = vrsqrt.pop %v724
        %v726 = vmul.f32 %v725, %v724
        %v727 = vmul.f32 %v726, %v725
        %v728 = vmul.f32 0.5, %v727
        %v729 = vsub.f32 1.5, %v728
        %v730 = vmul.f32 %v725, %v729
        %vm731 = vweird.f32 %v724
        %vm732 = vweird.f32 %v725
        %vm733 = vmor %vm731, %vm732
        %v734 = vsel %vm733, %v725, %v730
        %v735 = vmul.f32 %v719, %v734
        %v736 = vperm.slane %v381, 2
        %v737 = vmul.f32 %v735, %v736
        %v738 = vperm.slane %v381, 3
        %v739 = vadd.f32 %v737, %v738
        %740 = vst [vmem:[#allocation2] sm:$0xff] %v739
        %741 = vst [vmem:[#allocation3] sm:$0xff] %v682
        %742 = vst [vmem:[%s344] sm:$0xff] %v739
        %743 = vst [vmem:[%s351] sm:$0xff] %v682
        %s744 = sand.u32 %s191, 1
        %s745 = scalar_lea.sflag [#allocation6], %s744
        %s746 = sand.u32 %s191, 1
        %s747 = smul.addr %s746, 8
        %s748 = scalar_lea.vmem [#allocation7], %s747
        %s749 = sand.u32 %s219, 1
        %s750 = scalar_lea.sflag [#allocation9], %s749
        %s751 = sand.u32 %s219, 1
        %s752 = smul.addr %s751, 8
        %s753 = scalar_lea.vmem [#allocation8], %s752
        // Predicated region
        $region53: #{layer_norm_lstm.3} parent=43 // pred_check
          %p754 = pneg %p201
        $region54: #{layer_norm_lstm.3} parent=43 // pred_check_branch
          %756 = sbr.rel (%p754) target = $region56
        $region55: #{layer_norm_lstm.3} parent=43 // pred_region
          %758 = vsyncadd %s745, 0
          %s759 = smul.addr %s31, 2
          %s760 = sadd.s32 %s30, %s759
          %s761 = smul.addr %s760, 8
          %s762 = scalar_lea.hbm %s6, %s761
          %s764 = sshll.u32 %s748, 4
          %s765 = int_to_ptr.vmem [resolvable:$true] %s764
          %s766 = sshll.u32 %s762, 4
          %s767 = int_to_ptr.hbm [resolvable:$true] %s766
          %769 = dma.vmem_to_hbm [thread:$0]  %s765, 128, %s767, %s745
        $region56: #{layer_norm_lstm.3} parent=43 // pred_fallthru
          _
        // Predicated region
        $region57: #{layer_norm_lstm.3} parent=43 // pred_check
          %p770 = pneg %p229
        $region58: #{layer_norm_lstm.3} parent=43 // pred_check_branch
          %772 = sbr.rel (%p770) target = $region60
        $region59: #{layer_norm_lstm.3} parent=43 // pred_region
          %774 = vsyncadd %s750, 0
          %s775 = smul.addr %s31, 2
          %s776 = sadd.s32 %s30, %s775
          %s777 = smul.addr %s776, 8
          %s778 = scalar_lea.hbm %s7, %s777
          %s780 = sshll.u32 %s753, 4
          %s781 = int_to_ptr.vmem [resolvable:$true] %s780
          %s782 = sshll.u32 %s778, 4
          %s783 = int_to_ptr.hbm [resolvable:$true] %s782
          %785 = dma.vmem_to_hbm [thread:$0]  %s781, 128, %s783, %s750
        $region60: #{layer_norm_lstm.3} parent=43 // pred_fallthru
          _
      $region44: #{layer_norm_lstm.3} parent=5 // pred_fallthru
        _
      %p786 = scmp.le.s32.totalorder 2, %s21
      // Predicated region
      $region61: #{layer_norm_lstm.3} parent=5 // pred_check
        %p787 = pneg %p786
      $region62: #{layer_norm_lstm.3} parent=5 // pred_check_branch
        %789 = sbr.rel (%p787) target = $region64
      $region63: #{layer_norm_lstm.3} parent=5 // pred_region
        %s790 = ssub.s32 %s21, 2
        // Predicated region
        $region65: #{layer_norm_lstm.3} parent=63 // pred_check
          %p791 = pneg %p207
        $region66: #{layer_norm_lstm.3} parent=63 // pred_check_branch
          %793 = sbr.rel (%p791) target = $region68
        $region67: #{layer_norm_lstm.3} parent=63 // pred_region
          %s794 = sand.u32 %s192, 1
          %s795 = scalar_lea.sflag [#allocation6], %s794
          %s796 = sand.u32 %s192, 1
          %s797 = smul.addr %s796, 8
          %s798 = scalar_lea.vmem [#allocation7], %s797
          %800 = dma.done %s795, 128
        $region68: #{layer_norm_lstm.3} parent=63 // pred_fallthru
          _
        // Predicated region
        $region69: #{layer_norm_lstm.3} parent=63 // pred_check
          %p801 = pneg %p235
        $region70: #{layer_norm_lstm.3} parent=63 // pred_check_branch
          %803 = sbr.rel (%p801) target = $region72
        $region71: #{layer_norm_lstm.3} parent=63 // pred_region
          %s804 = sand.u32 %s220, 1
          %s805 = scalar_lea.sflag [#allocation9], %s804
          %s806 = sand.u32 %s220, 1
          %s807 = smul.addr %s806, 8
          %s808 = scalar_lea.vmem [#allocation8], %s807
          %810 = dma.done %s805, 128
        $region72: #{layer_norm_lstm.3} parent=63 // pred_fallthru
          _
      $region64: #{layer_norm_lstm.3} parent=5 // pred_fallthru
        _
    $region6: #{layer_norm_lstm.3} parent=1 // loop_footer
      %s25 = sadd.s32 1, %s21
    $region7: #{layer_norm_lstm.3} parent=1 // loop_footer_branch
      %20 = sbr.rel target = $region3
    $region8: #{layer_norm_lstm.3} parent=1 // loop_exit
      _
    %811 = vsyncpa [#allocation5], 1
    %s812 = scalar_lea.sflag [#allocation5], 1
    %813 = vsyncpa %s812, 1
    %814 = vsyncpa [#allocation6], 1
    %s815 = scalar_lea.sflag [#allocation6], 1
    %816 = vsyncpa %s815, 1
    %817 = vsyncpa [#allocation9], 1
    %s818 = scalar_lea.sflag [#allocation9], 1
    %819 = vsyncpa %s818, 1

// kernel: layer_norm_lstm.2
$region0: #{layer_norm_lstm.2}
  #allocation0 [shape = 'u32[]', space=smem, size = 0x4, offset = 0x4, fixed_abs, tag = 'smem constant byte address 0x4 - core index']
  #allocation1 [shape = 'u32[72,128]{1,0:T(1,128)}', space=vmem, size = 0x9000, scoped, tag = 'internal scratch']
  %s0 = inlined_call_operand.hbm [shape: f32[128,64], index: 0, kind: input, shape index: {}]
  %s1 = inlined_call_operand.hbm [shape: f32[64,512], index: 1, kind: input, shape index: {}]
  %s2 = inlined_call_operand.hbm [shape: f32[1,512], index: 2, kind: input, shape index: {}]
  %s3 = inlined_call_operand.vmem [shape: f32[1,512], index: 3, kind: input, shape index: {}]
  %s4 = inlined_call_operand.hbm [shape: f32[1,512], index: 4, kind: input, shape index: {}]
  %s5 = inlined_call_operand.vmem [shape: f32[128,512], index: 5, kind: output, shape index: {}]
  %s6 = sld [smem:[#allocation0]]
  $region46: #{layer_norm_lstm.2} parent=0
    _
  %s8 = ssub.s32 1, %s6
  %s9 = scalar_select 0, %s8, %s6
  $region1: #{layer_norm_lstm.2} parent=0
    #allocation2 [shape = 'u8[65536]{0}', space=vmem, size = 0x10000, scoped, tag = 'input window, operand 0, single buffered']
    #allocation3 [shape = 's32[1]{0}', space=sflag, size = 0x4, scoped, tag = 'scoped memory for layer_norm_lstm.2']
    #allocation4 [shape = 'u8[131072]{0}', space=vmem, size = 0x20000, scoped, tag = 'input window, operand 1, single buffered']
    #allocation5 [shape = 's32[1]{0}', space=sflag, size = 0x4, scoped, tag = 'scoped memory for layer_norm_lstm.2']
    #allocation6 [shape = 'u8[2048]{0}', space=vmem, size = 0x800, scoped, tag = 'input window, operand 2, single buffered']
    #allocation7 [shape = 'u8[2048]{0}', space=vmem, size = 0x800, scoped, tag = 'input window, operand 4, single buffered']
    #allocation8 [shape = 's32[1]{0}', space=sflag, size = 0x4, scoped, tag = 'scoped memory for layer_norm_lstm.2']
    %10 = vsyncpa [#allocation3], 0
    %11 = vsyncpa [#allocation5], 0
    %12 = vsyncpa [#allocation8], 0
    // Predicated region
    $region2: #{layer_norm_lstm.2} parent=1 // pred_check
      _
    $region3: #{layer_norm_lstm.2} parent=1 // pred_check_branch
      %14 = sbr.rel (0) target = $region5
    $region4: #{layer_norm_lstm.2} parent=1 // pred_region
      %16 = vsyncadd [#allocation3], 0
      %s17 = sshll.u32 %s0, 4
      %s18 = int_to_ptr.hbm [resolvable:$true] %s17
      %s19 = sshll.u32 [#allocation2], 4
      %s20 = int_to_ptr.vmem [resolvable:$true] %s19
      %25 = dma.hbm_to_vmem [thread:$0]  %s18, 2048, %s20, [#allocation3], 128, 128, 8
    $region5: #{layer_norm_lstm.2} parent=1 // pred_fallthru
      _
    // Predicated region
    $region6: #{layer_norm_lstm.2} parent=1 // pred_check
      _
    $region7: #{layer_norm_lstm.2} parent=1 // pred_check_branch
      %27 = sbr.rel (0) target = $region9
    $region8: #{layer_norm_lstm.2} parent=1 // pred_region
      %29 = vsyncadd [#allocation5], 0
      %s30 = sshll.u32 %s1, 4
      %s31 = int_to_ptr.hbm [resolvable:$true] %s30
      %s32 = sshll.u32 [#allocation4], 4
      %s33 = int_to_ptr.vmem [resolvable:$true] %s32
      %38 = dma.hbm_to_vmem [thread:$0]  %s31, 4096, %s33, [#allocation5], 512, 512, 32
    $region9: #{layer_norm_lstm.2} parent=1 // pred_fallthru
      _
    // Predicated region
    $region10: #{layer_norm_lstm.2} parent=1 // pred_check
      _
    $region11: #{layer_norm_lstm.2} parent=1 // pred_check_branch
      %40 = sbr.rel (0) target = $region13
    $region12: #{layer_norm_lstm.2} parent=1 // pred_region
      %42 = vsyncadd [#allocation5], 0
      %s44 = sshll.u32 %s2, 4
      %s45 = int_to_ptr.hbm [resolvable:$true] %s44
      %s46 = sshll.u32 [#allocation6], 4
      %s47 = int_to_ptr.vmem [resolvable:$true] %s46
      %49 = dma.hbm_to_vmem [thread:$0]  %s45, 64, %s47, [#allocation5]
    $region13: #{layer_norm_lstm.2} parent=1 // pred_fallthru
      _
    // Predicated region
    $region14: #{layer_norm_lstm.2} parent=1 // pred_check
      _
    $region15: #{layer_norm_lstm.2} parent=1 // pred_check_branch
      %51 = sbr.rel (0) target = $region17
    $region16: #{layer_norm_lstm.2} parent=1 // pred_region
      _
    $region17: #{layer_norm_lstm.2} parent=1 // pred_fallthru
      _
    // Predicated region
    $region18: #{layer_norm_lstm.2} parent=1 // pred_check
      _
    $region19: #{layer_norm_lstm.2} parent=1 // pred_check_branch
      %53 = sbr.rel (0) target = $region21
    $region20: #{layer_norm_lstm.2} parent=1 // pred_region
      %55 = vsyncadd [#allocation8], 0
      %s57 = sshll.u32 %s4, 4
      %s58 = int_to_ptr.hbm [resolvable:$true] %s57
      %s59 = sshll.u32 [#allocation7], 4
      %s60 = int_to_ptr.vmem [resolvable:$true] %s59
      %62 = dma.hbm_to_vmem [thread:$0]  %s58, 64, %s60, [#allocation8]
    $region21: #{layer_norm_lstm.2} parent=1 // pred_fallthru
      _
    // Predicated region
    $region22: #{layer_norm_lstm.2} parent=1 // pred_check
      _
    $region23: #{layer_norm_lstm.2} parent=1 // pred_check_branch
      %64 = sbr.rel (0) target = $region25
    $region24: #{layer_norm_lstm.2} parent=1 // pred_region
      %66 = dma.done [#allocation3], 2048
    $region25: #{layer_norm_lstm.2} parent=1 // pred_fallthru
      _
    // Predicated region
    $region26: #{layer_norm_lstm.2} parent=1 // pred_check
      _
    $region27: #{layer_norm_lstm.2} parent=1 // pred_check_branch
      %68 = sbr.rel (0) target = $region29
    $region28: #{layer_norm_lstm.2} parent=1 // pred_region
      %70 = dma.done [#allocation5], 4096
    $region29: #{layer_norm_lstm.2} parent=1 // pred_fallthru
      _
    // Predicated region
    $region30: #{layer_norm_lstm.2} parent=1 // pred_check
      _
    $region31: #{layer_norm_lstm.2} parent=1 // pred_check_branch
      %72 = sbr.rel (0) target = $region33
    $region32: #{layer_norm_lstm.2} parent=1 // pred_region
      %74 = dma.done [#allocation5], 64
    $region33: #{layer_norm_lstm.2} parent=1 // pred_fallthru
      _
    // Predicated region
    $region34: #{layer_norm_lstm.2} parent=1 // pred_check
      _
    $region35: #{layer_norm_lstm.2} parent=1 // pred_check_branch
      %76 = sbr.rel (0) target = $region37
    $region36: #{layer_norm_lstm.2} parent=1 // pred_region
      %78 = dma.done [#allocation8], 64
    $region37: #{layer_norm_lstm.2} parent=1 // pred_fallthru
      _
    %v79 = vld [vmem:[#allocation2] sm:$0xff]
    %v80 = vld [vmem:[#allocation2 + $0x8] sm:$0xff]
    %v81 = vld [vmem:[#allocation2 + $0x10] sm:$0xff]
    %v82 = vld [vmem:[#allocation2 + $0x18] sm:$0xff]
    %v83 = vld [vmem:[#allocation2 + $0x20] sm:$0xff]
    %v84 = vld [vmem:[#allocation2 + $0x28] sm:$0xff]
    %v85 = vld [vmem:[#allocation2 + $0x30] sm:$0xff]
    %v86 = vld [vmem:[#allocation2 + $0x38] sm:$0xff]
    %v87 = vld [vmem:[#allocation2 + $0x40] sm:$0xff]
    %v88 = vld [vmem:[#allocation2 + $0x48] sm:$0xff]
    %v89 = vld [vmem:[#allocation2 + $0x50] sm:$0xff]
    %v90 = vld [vmem:[#allocation2 + $0x58] sm:$0xff]
    %v91 = vld [vmem:[#allocation2 + $0x60] sm:$0xff]
    %v92 = vld [vmem:[#allocation2 + $0x68] sm:$0xff]
    %v93 = vld [vmem:[#allocation2 + $0x70] sm:$0xff]
    %v94 = vld [vmem:[#allocation2 + $0x78] sm:$0xff]
    %v95 = vld [vmem:[#allocation4] sm:$0xff]
    %v96 = vld [vmem:[#allocation4 + $0x8] sm:$0xff]
    %v97 = vld [vmem:[#allocation4 + $0x10] sm:$0xff]
    %v98 = vld [vmem:[#allocation4 + $0x18] sm:$0xff]
    %v99 = vld [vmem:[#allocation4 + $0x20] sm:$0xff]
    %v100 = vld [vmem:[#allocation4 + $0x28] sm:$0xff]
    %v101 = vld [vmem:[#allocation4 + $0x30] sm:$0xff]
    %v102 = vld [vmem:[#allocation4 + $0x38] sm:$0xff]
    %v103 = vld [vmem:[#allocation4 + $0x40] sm:$0xff]
    %v104 = vld [vmem:[#allocation4 + $0x48] sm:$0xff]
    %v105 = vld [vmem:[#allocation4 + $0x50] sm:$0xff]
    %v106 = vld [vmem:[#allocation4 + $0x58] sm:$0xff]
    %v107 = vld [vmem:[#allocation4 + $0x60] sm:$0xff]
    %v108 = vld [vmem:[#allocation4 + $0x68] sm:$0xff]
    %v109 = vld [vmem:[#allocation4 + $0x70] sm:$0xff]
    %v110 = vld [vmem:[#allocation4 + $0x78] sm:$0xff]
    %v111 = vld [vmem:[#allocation4 + $0x80] sm:$0xff]
    %v112 = vld [vmem:[#allocation4 + $0x88] sm:$0xff]
    %v113 = vld [vmem:[#allocation4 + $0x90] sm:$0xff]
    %v114 = vld [vmem:[#allocation4 + $0x98] sm:$0xff]
    %v115 = vld [vmem:[#allocation4 + $0xa0] sm:$0xff]
    %v116 = vld [vmem:[#allocation4 + $0xa8] sm:$0xff]
    %v117 = vld [vmem:[#allocation4 + $0xb0] sm:$0xff]
    %v118 = vld [vmem:[#allocation4 + $0xb8] sm:$0xff]
    %v119 = vld [vmem:[#allocation4 + $0xc0] sm:$0xff]
    %v120 = vld [vmem:[#allocation4 + $0xc8] sm:$0xff]
    %v121 = vld [vmem:[#allocation4 + $0xd0] sm:$0xff]
    %v122 = vld [vmem:[#allocation4 + $0xd8] sm:$0xff]
    %v123 = vld [vmem:[#allocation4 + $0xe0] sm:$0xff]
    %v124 = vld [vmem:[#allocation4 + $0xe8] sm:$0xff]
    %v125 = vld [vmem:[#allocation4 + $0xf0] sm:$0xff]
    %v126 = vld [vmem:[#allocation4 + $0xf8] sm:$0xff]
    %v127 = vld [vmem:[#allocation6] sm:$0xf]
    %v129 = vperm.slane %v127, 0
    %v130 = vperm.slane %v127, 1
    %v131 = vperm.slane %v127, 2
    %v132 = vperm.slane %v127, 3
    %vm137 = vcmask 523264
    %v139 = vsel %vm137, %v79, 0
    %v142 = vsel %vm137, %v80, 0
    %v145 = vsel %vm137, %v81, 0
    %v148 = vsel %vm137, %v82, 0
    %v151 = vsel %vm137, %v83, 0
    %v154 = vsel %vm137, %v84, 0
    %v157 = vsel %vm137, %v85, 0
    %v160 = vsel %vm137, %v86, 0
    %v163 = vsel %vm137, %v87, 0
    %v166 = vsel %vm137, %v88, 0
    %v169 = vsel %vm137, %v89, 0
    %v172 = vsel %vm137, %v90, 0
    %v175 = vsel %vm137, %v91, 0
    %v178 = vsel %vm137, %v92, 0
    %v181 = vsel %vm137, %v93, 0
    %v184 = vsel %vm137, %v94, 0
    %186 = vmatpush.msra.mxu0 0.0
    %187 = vmatpush.msra.mxu0 0.0
    %188 = vmatpush.msra.mxu0 0.0
    %189 = vmatpush.msra.mxu0 0.0
    %190 = vmatpush.msra.mxu0 0.0
    %191 = vmatpush.msra.mxu0 0.0
    %192 = vmatpush.msra.mxu0 0.0
    %193 = vmatpush.msra.mxu0 0.0
    %194 = vmatpush.msra.mxu0 %v123
    %195 = vmatpush.msra.mxu0 %v119
    %196 = vmatpush.msra.mxu0 %v115
    %197 = vmatpush.msra.mxu0 %v111
    %198 = vmatpush.msra.mxu0 %v107
    %199 = vmatpush.msra.mxu0 %v103
    %200 = vmatpush.msra.mxu0 %v99
    %201 = vmatpush.msra.mxu0 %v95
    %202 = vmatmul.f32.gmra.mxu0 %v139
    %v203 = vpop.f32.mrf.mxu0
    %v204 = vadd.f32 %v129, %v203
    %205 = vmatmul.f32.gmra.mxu0 %v142
    %v206 = vpop.f32.mrf.mxu0
    %v207 = vadd.f32 %v129, %v206
    %208 = vmatmul.f32.gmra.mxu0 %v145
    %v209 = vpop.f32.mrf.mxu0
    %v210 = vadd.f32 %v129, %v209
    %211 = vmatmul.f32.gmra.mxu0 %v148
    %v212 = vpop.f32.mrf.mxu0
    %v213 = vadd.f32 %v129, %v212
    %214 = vmatmul.f32.gmra.mxu0 %v151
    %v215 = vpop.f32.mrf.mxu0
    %v216 = vadd.f32 %v129, %v215
    %217 = vmatmul.f32.gmra.mxu0 %v154
    %v218 = vpop.f32.mrf.mxu0
    %v219 = vadd.f32 %v129, %v218
    %220 = vmatmul.f32.gmra.mxu0 %v157
    %v221 = vpop.f32.mrf.mxu0
    %v222 = vadd.f32 %v129, %v221
    %223 = vmatmul.f32.gmra.mxu0 %v160
    %v224 = vpop.f32.mrf.mxu0
    %v225 = vadd.f32 %v129, %v224
    %226 = vmatmul.f32.gmra.mxu0 %v163
    %v227 = vpop.f32.mrf.mxu0
    %v228 = vadd.f32 %v129, %v227
    %229 = vmatmul.f32.gmra.mxu0 %v166
    %v230 = vpop.f32.mrf.mxu0
    %v231 = vadd.f32 %v129, %v230
    %232 = vmatmul.f32.gmra.mxu0 %v169
    %v233 = vpop.f32.mrf.mxu0
    %v234 = vadd.f32 %v129, %v233
    %235 = vmatmul.f32.gmra.mxu0 %v172
    %v236 = vpop.f32.mrf.mxu0
    %v237 = vadd.f32 %v129, %v236
    %238 = vmatmul.f32.gmra.mxu0 %v175
    %v239 = vpop.f32.mrf.mxu0
    %v240 = vadd.f32 %v129, %v239
    %241 = vmatmul.f32.gmra.mxu0 %v178
    %v242 = vpop.f32.mrf.mxu0
    %v243 = vadd.f32 %v129, %v242
    %244 = vmatmul.f32.gmra.mxu0 %v181
    %v245 = vpop.f32.mrf.mxu0
    %v246 = vadd.f32 %v129, %v245
    %247 = vmatmul.f32.gmra.mxu0 %v184
    %v248 = vpop.f32.mrf.mxu0
    %v249 = vadd.f32 %v129, %v248
    %250 = vdwg.mxu0
    %251 = vmatpush.msra.mxu0 0.0
    %252 = vmatpush.msra.mxu0 0.0
    %253 = vmatpush.msra.mxu0 0.0
    %254 = vmatpush.msra.mxu0 0.0
    %255 = vmatpush.msra.mxu0 0.0
    %256 = vmatpush.msra.mxu0 0.0
    %257 = vmatpush.msra.mxu0 0.0
    %258 = vmatpush.msra.mxu0 0.0
    %259 = vmatpush.msra.mxu0 %v124
    %260 = vmatpush.msra.mxu0 %v120
    %261 = vmatpush.msra.mxu0 %v116
    %262 = vmatpush.msra.mxu0 %v112
    %263 = vmatpush.msra.mxu0 %v108
    %264 = vmatpush.msra.mxu0 %v104
    %265 = vmatpush.msra.mxu0 %v100
    %266 = vmatpush.msra.mxu0 %v96
    %267 = vmatmul.f32.gmra.mxu0 %v139
    %v268 = vpop.f32.mrf.mxu0
    %v269 = vadd.f32 %v130, %v268
    %270 = vmatmul.f32.gmra.mxu0 %v142
    %v271 = vpop.f32.mrf.mxu0
    %v272 = vadd.f32 %v130, %v271
    %273 = vmatmul.f32.gmra.mxu0 %v145
    %v274 = vpop.f32.mrf.mxu0
    %v275 = vadd.f32 %v130, %v274
    %276 = vmatmul.f32.gmra.mxu0 %v148
    %v277 = vpop.f32.mrf.mxu0
    %v278 = vadd.f32 %v130, %v277
    %279 = vmatmul.f32.gmra.mxu0 %v151
    %v280 = vpop.f32.mrf.mxu0
    %v281 = vadd.f32 %v130, %v280
    %282 = vmatmul.f32.gmra.mxu0 %v154
    %v283 = vpop.f32.mrf.mxu0
    %v284 = vadd.f32 %v130, %v283
    %285 = vmatmul.f32.gmra.mxu0 %v157
    %v286 = vpop.f32.mrf.mxu0
    %v287 = vadd.f32 %v130, %v286
    %288 = vmatmul.f32.gmra.mxu0 %v160
    %v289 = vpop.f32.mrf.mxu0
    %v290 = vadd.f32 %v130, %v289
    %291 = vmatmul.f32.gmra.mxu0 %v163
    %v292 = vpop.f32.mrf.mxu0
    %v293 = vadd.f32 %v130, %v292
    %294 = vmatmul.f32.gmra.mxu0 %v166
    %v295 = vpop.f32.mrf.mxu0
    %v296 = vadd.f32 %v130, %v295
    %297 = vmatmul.f32.gmra.mxu0 %v169
    %v298 = vpop.f32.mrf.mxu0
    %v299 = vadd.f32 %v130, %v298
    %300 = vmatmul.f32.gmra.mxu0 %v172
    %v301 = vpop.f32.mrf.mxu0
    %v302 = vadd.f32 %v130, %v301
    %303 = vmatmul.f32.gmra.mxu0 %v175
    %v304 = vpop.f32.mrf.mxu0
    %v305 = vadd.f32 %v130, %v304
    %306 = vmatmul.f32.gmra.mxu0 %v178
    %v307 = vpop.f32.mrf.mxu0
    %v308 = vadd.f32 %v130, %v307
    %309 = vmatmul.f32.gmra.mxu0 %v181
    %v310 = vpop.f32.mrf.mxu0
    %v311 = vadd.f32 %v130, %v310
    %312 = vmatmul.f32.gmra.mxu0 %v184
    %v313 = vpop.f32.mrf.mxu0
    %v314 = vadd.f32 %v130, %v313
    %315 = vdwg.mxu0
    %316 = vmatpush.msra.mxu0 0.0
    %317 = vmatpush.msra.mxu0 0.0
    %318 = vmatpush.msra.mxu0 0.0
    %319 = vmatpush.msra.mxu0 0.0
    %320 = vmatpush.msra.mxu0 0.0
    %321 = vmatpush.msra.mxu0 0.0
    %322 = vmatpush.msra.mxu0 0.0
    %323 = vmatpush.msra.mxu0 0.0
    %324 = vmatpush.msra.mxu0 %v125
    %325 = vmatpush.msra.mxu0 %v121
    %326 = vmatpush.msra.mxu0 %v117
    %327 = vmatpush.msra.mxu0 %v113
    %328 = vmatpush.msra.mxu0 %v109
    %329 = vmatpush.msra.mxu0 %v105
    %330 = vmatpush.msra.mxu0 %v101
    %331 = vmatpush.msra.mxu0 %v97
    %332 = vmatmul.f32.gmra.mxu0 %v139
    %v333 = vpop.f32.mrf.mxu0
    %v334 = vadd.f32 %v131, %v333
    %335 = vmatmul.f32.gmra.mxu0 %v142
    %v336 = vpop.f32.mrf.mxu0
    %v337 = vadd.f32 %v131, %v336
    %338 = vmatmul.f32.gmra.mxu0 %v145
    %v339 = vpop.f32.mrf.mxu0
    %v340 = vadd.f32 %v131, %v339
    %341 = vmatmul.f32.gmra.mxu0 %v148
    %v342 = vpop.f32.mrf.mxu0
    %v343 = vadd.f32 %v131, %v342
    %344 = vmatmul.f32.gmra.mxu0 %v151
    %v345 = vpop.f32.mrf.mxu0
    %v346 = vadd.f32 %v131, %v345
    %347 = vmatmul.f32.gmra.mxu0 %v154
    %v348 = vpop.f32.mrf.mxu0
    %v349 = vadd.f32 %v131, %v348
    %350 = vmatmul.f32.gmra.mxu0 %v157
    %v351 = vpop.f32.mrf.mxu0
    %v352 = vadd.f32 %v131, %v351
    %353 = vmatmul.f32.gmra.mxu0 %v160
    %v354 = vpop.f32.mrf.mxu0
    %v355 = vadd.f32 %v131, %v354
    %356 = vmatmul.f32.gmra.mxu0 %v163
    %v357 = vpop.f32.mrf.mxu0
    %v358 = vadd.f32 %v131, %v357
    %359 = vmatmul.f32.gmra.mxu0 %v166
    %v360 = vpop.f32.mrf.mxu0
    %v361 = vadd.f32 %v131, %v360
    %362 = vmatmul.f32.gmra.mxu0 %v169
    %v363 = vpop.f32.mrf.mxu0
    %v364 = vadd.f32 %v131, %v363
    %365 = vmatmul.f32.gmra.mxu0 %v172
    %v366 = vpop.f32.mrf.mxu0
    %v367 = vadd.f32 %v131, %v366
    %368 = vmatmul.f32.gmra.mxu0 %v175
    %v369 = vpop.f32.mrf.mxu0
    %v370 = vadd.f32 %v131, %v369
    %371 = vmatmul.f32.gmra.mxu0 %v178
    %v372 = vpop.f32.mrf.mxu0
    %v373 = vadd.f32 %v131, %v372
    %374 = vmatmul.f32.gmra.mxu0 %v181
    %v375 = vpop.f32.mrf.mxu0
    %v376 = vadd.f32 %v131, %v375
    %377 = vmatmul.f32.gmra.mxu0 %v184
    %v378 = vpop.f32.mrf.mxu0
    %v379 = vadd.f32 %v131, %v378
    %380 = vdwg.mxu0
    %381 = vmatpush.msra.mxu0 0.0
    %382 = vmatpush.msra.mxu0 0.0
    %383 = vmatpush.msra.mxu0 0.0
    %384 = vmatpush.msra.mxu0 0.0
    %385 = vmatpush.msra.mxu0 0.0
    %386 = vmatpush.msra.mxu0 0.0
    %387 = vmatpush.msra.mxu0 0.0
    %388 = vmatpush.msra.mxu0 0.0
    %389 = vmatpush.msra.mxu0 %v126
    %390 = vmatpush.msra.mxu0 %v122
    %391 = vmatpush.msra.mxu0 %v118
    %392 = vmatpush.msra.mxu0 %v114
    %393 = vmatpush.msra.mxu0 %v110
    %394 = vmatpush.msra.mxu0 %v106
    %395 = vmatpush.msra.mxu0 %v102
    %396 = vmatpush.msra.mxu0 %v98
    %397 = vmatmul.f32.gmra.mxu0 %v139
    %v398 = vpop.f32.mrf.mxu0
    %v399 = vadd.f32 %v132, %v398
    %400 = vmatmul.f32.gmra.mxu0 %v142
    %v401 = vpop.f32.mrf.mxu0
    %v402 = vadd.f32 %v132, %v401
    %403 = vmatmul.f32.gmra.mxu0 %v145
    %v404 = vpop.f32.mrf.mxu0
    %v405 = vadd.f32 %v132, %v404
    %406 = vmatmul.f32.gmra.mxu0 %v148
    %v407 = vpop.f32.mrf.mxu0
    %v408 = vadd.f32 %v132, %v407
    %409 = vmatmul.f32.gmra.mxu0 %v151
    %v410 = vpop.f32.mrf.mxu0
    %v411 = vadd.f32 %v132, %v410
    %412 = vmatmul.f32.gmra.mxu0 %v154
    %v413 = vpop.f32.mrf.mxu0
    %v414 = vadd.f32 %v132, %v413
    %415 = vmatmul.f32.gmra.mxu0 %v157
    %v416 = vpop.f32.mrf.mxu0
    %v417 = vadd.f32 %v132, %v416
    %418 = vmatmul.f32.gmra.mxu0 %v160
    %v419 = vpop.f32.mrf.mxu0
    %v420 = vadd.f32 %v132, %v419
    %421 = vmatmul.f32.gmra.mxu0 %v163
    %v422 = vpop.f32.mrf.mxu0
    %v423 = vadd.f32 %v132, %v422
    %424 = vmatmul.f32.gmra.mxu0 %v166
    %v425 = vpop.f32.mrf.mxu0
    %v426 = vadd.f32 %v132, %v425
    %427 = vmatmul.f32.gmra.mxu0 %v169
    %v428 = vpop.f32.mrf.mxu0
    %v429 = vadd.f32 %v132, %v428
    %430 = vmatmul.f32.gmra.mxu0 %v172
    %v431 = vpop.f32.mrf.mxu0
    %v432 = vadd.f32 %v132, %v431
    %433 = vmatmul.f32.gmra.mxu0 %v175
    %v434 = vpop.f32.mrf.mxu0
    %v435 = vadd.f32 %v132, %v434
    %436 = vmatmul.f32.gmra.mxu0 %v178
    %v437 = vpop.f32.mrf.mxu0
    %v438 = vadd.f32 %v132, %v437
    %439 = vmatmul.f32.gmra.mxu0 %v181
    %v440 = vpop.f32.mrf.mxu0
    %v441 = vadd.f32 %v132, %v440
    %442 = vmatmul.f32.gmra.mxu0 %v184
    %v443 = vpop.f32.mrf.mxu0
    %v444 = vadd.f32 %v132, %v443
    %445 = vdwg.mxu0
    %v446 = vld [vmem:[%s3] sm:$0xf]
    %v447 = vld [vmem:[#allocation7] sm:$0xf]
    %v448 = vadd.f32 %v204, %v269
    %v449 = vadd.f32 %v448, %v334
    %v450 = vadd.f32 %v449, %v399
    %451 = vadd.xlane.f32.xlu0 %v450
    %v452 = vpop.xlane.xlu0 %451
    %v453 = vadd.f32 %v207, %v272
    %v454 = vadd.f32 %v453, %v337
    %v455 = vadd.f32 %v454, %v402
    %456 = vadd.xlane.f32.xlu0 %v455
    %v457 = vpop.xlane.xlu0 %456
    %v458 = vadd.f32 %v210, %v275
    %v459 = vadd.f32 %v458, %v340
    %v460 = vadd.f32 %v459, %v405
    %461 = vadd.xlane.f32.xlu0 %v460
    %v462 = vpop.xlane.xlu0 %461
    %v463 = vadd.f32 %v213, %v278
    %v464 = vadd.f32 %v463, %v343
    %v465 = vadd.f32 %v464, %v408
    %466 = vadd.xlane.f32.xlu0 %v465
    %v467 = vpop.xlane.xlu0 %466
    %v468 = vadd.f32 %v216, %v281
    %v469 = vadd.f32 %v468, %v346
    %v470 = vadd.f32 %v469, %v411
    %471 = vadd.xlane.f32.xlu0 %v470
    %v472 = vpop.xlane.xlu0 %471
    %v473 = vadd.f32 %v219, %v284
    %v474 = vadd.f32 %v473, %v349
    %v475 = vadd.f32 %v474, %v414
    %476 = vadd.xlane.f32.xlu0 %v475
    %v477 = vpop.xlane.xlu0 %476
    %v478 = vadd.f32 %v222, %v287
    %v479 = vadd.f32 %v478, %v352
    %v480 = vadd.f32 %v479, %v417
    %481 = vadd.xlane.f32.xlu0 %v480
    %v482 = vpop.xlane.xlu0 %481
    %v483 = vadd.f32 %v225, %v290
    %v484 = vadd.f32 %v483, %v355
    %v485 = vadd.f32 %v484, %v420
    %486 = vadd.xlane.f32.xlu0 %v485
    %v487 = vpop.xlane.xlu0 %486
    %v488 = vadd.f32 %v228, %v293
    %v489 = vadd.f32 %v488, %v358
    %v490 = vadd.f32 %v489, %v423
    %491 = vadd.xlane.f32.xlu0 %v490
    %v492 = vpop.xlane.xlu0 %491
    %v493 = vadd.f32 %v231, %v296
    %v494 = vadd.f32 %v493, %v361
    %v495 = vadd.f32 %v494, %v426
    %496 = vadd.xlane.f32.xlu0 %v495
    %v497 = vpop.xlane.xlu0 %496
    %v498 = vadd.f32 %v234, %v299
    %v499 = vadd.f32 %v498, %v364
    %v500 = vadd.f32 %v499, %v429
    %501 = vadd.xlane.f32.xlu0 %v500
    %v502 = vpop.xlane.xlu0 %501
    %v503 = vadd.f32 %v237, %v302
    %v504 = vadd.f32 %v503, %v367
    %v505 = vadd.f32 %v504, %v432
    %506 = vadd.xlane.f32.xlu0 %v505
    %v507 = vpop.xlane.xlu0 %506
    %v508 = vadd.f32 %v240, %v305
    %v509 = vadd.f32 %v508, %v370
    %v510 = vadd.f32 %v509, %v435
    %511 = vadd.xlane.f32.xlu0 %v510
    %v512 = vpop.xlane.xlu0 %511
    %v513 = vadd.f32 %v243, %v308
    %v514 = vadd.f32 %v513, %v373
    %v515 = vadd.f32 %v514, %v438
    %516 = vadd.xlane.f32.xlu0 %v515
    %v517 = vpop.xlane.xlu0 %516
    %v518 = vadd.f32 %v246, %v311
    %v519 = vadd.f32 %v518, %v376
    %v520 = vadd.f32 %v519, %v441
    %521 = vadd.xlane.f32.xlu0 %v520
    %v522 = vpop.xlane.xlu0 %521
    %v523 = vadd.f32 %v249, %v314
    %v524 = vadd.f32 %v523, %v379
    %v525 = vadd.f32 %v524, %v444
    %526 = vadd.xlane.f32.xlu0 %v525
    %v527 = vpop.xlane.xlu0 %526
    %v528 = vrcp.pop 512.0
    %v529 = vmul.f32 512.0, %v528
    %v530 = vsub.f32 1.0, %v529
    %v531 = vmul.f32 %v528, %v530
    %v532 = vadd.f32 %v528, %v531
    %vm533 = vweird.f32 %v528
    %v534 = vsel %vm533, %v528, %v532
    %v535 = vmul.f32 %v452, %v534
    %v536 = vmul.f32 %v457, %v534
    %v537 = vmul.f32 %v462, %v534
    %v538 = vmul.f32 %v467, %v534
    %v539 = vmul.f32 %v472, %v534
    %v540 = vmul.f32 %v477, %v534
    %v541 = vmul.f32 %v482, %v534
    %v542 = vmul.f32 %v487, %v534
    %v543 = vmul.f32 %v492, %v534
    %v544 = vmul.f32 %v497, %v534
    %v545 = vmul.f32 %v502, %v534
    %v546 = vmul.f32 %v507, %v534
    %v547 = vmul.f32 %v512, %v534
    %v548 = vmul.f32 %v517, %v534
    %v549 = vmul.f32 %v522, %v534
    %v550 = vmul.f32 %v527, %v534
    %v551 = vsub.f32 %v204, %v535
    %v552 = vsub.f32 %v269, %v535
    %v553 = vsub.f32 %v334, %v535
    %v554 = vsub.f32 %v399, %v535
    %v555 = vsub.f32 %v207, %v536
    %v556 = vsub.f32 %v272, %v536
    %v557 = vsub.f32 %v337, %v536
    %v558 = vsub.f32 %v402, %v536
    %v559 = vsub.f32 %v210, %v537
    %v560 = vsub.f32 %v275, %v537
    %v561 = vsub.f32 %v340, %v537
    %v562 = vsub.f32 %v405, %v537
    %v563 = vsub.f32 %v213, %v538
    %v564 = vsub.f32 %v278, %v538
    %v565 = vsub.f32 %v343, %v538
    %v566 = vsub.f32 %v408, %v538
    %v567 = vsub.f32 %v216, %v539
    %v568 = vsub.f32 %v281, %v539
    %v569 = vsub.f32 %v346, %v539
    %v570 = vsub.f32 %v411, %v539
    %v571 = vsub.f32 %v219, %v540
    %v572 = vsub.f32 %v284, %v540
    %v573 = vsub.f32 %v349, %v540
    %v574 = vsub.f32 %v414, %v540
    %v575 = vsub.f32 %v222, %v541
    %v576 = vsub.f32 %v287, %v541
    %v577 = vsub.f32 %v352, %v541
    %v578 = vsub.f32 %v417, %v541
    %v579 = vsub.f32 %v225, %v542
    %v580 = vsub.f32 %v290, %v542
    %v581 = vsub.f32 %v355, %v542
    %v582 = vsub.f32 %v420, %v542
    %v583 = vsub.f32 %v228, %v543
    %v584 = vsub.f32 %v293, %v543
    %v585 = vsub.f32 %v358, %v543
    %v586 = vsub.f32 %v423, %v543
    %v587 = vsub.f32 %v231, %v544
    %v588 = vsub.f32 %v296, %v544
    %v589 = vsub.f32 %v361, %v544
    %v590 = vsub.f32 %v426, %v544
    %v591 = vsub.f32 %v234, %v545
    %v592 = vsub.f32 %v299, %v545
    %v593 = vsub.f32 %v364, %v545
    %v594 = vsub.f32 %v429, %v545
    %v595 = vsub.f32 %v237, %v546
    %v596 = vsub.f32 %v302, %v546
    %v597 = vsub.f32 %v367, %v546
    %v598 = vsub.f32 %v432, %v546
    %v599 = vsub.f32 %v240, %v547
    %v600 = vsub.f32 %v305, %v547
    %v601 = vsub.f32 %v370, %v547
    %v602 = vsub.f32 %v435, %v547
    %v603 = vsub.f32 %v243, %v548
    %v604 = vsub.f32 %v308, %v548
    %v605 = vsub.f32 %v373, %v548
    %v606 = vsub.f32 %v438, %v548
    %v607 = vsub.f32 %v246, %v549
    %v608 = vsub.f32 %v311, %v549
    %v609 = vsub.f32 %v376, %v549
    %v610 = vsub.f32 %v441, %v549
    %v611 = vsub.f32 %v249, %v550
    %v612 = vsub.f32 %v314, %v550
    %v613 = vsub.f32 %v379, %v550
    %v614 = vsub.f32 %v444, %v550
    %v615 = vmul.f32 %v551, %v551
    %v616 = vmul.f32 %v552, %v552
    %v617 = vmul.f32 %v553, %v553
    %v618 = vmul.f32 %v554, %v554
    %v619 = vmul.f32 %v555, %v555
    %v620 = vmul.f32 %v556, %v556
    %v621 = vmul.f32 %v557, %v557
    %v622 = vmul.f32 %v558, %v558
    %v623 = vmul.f32 %v559, %v559
    %v624 = vmul.f32 %v560, %v560
    %v625 = vmul.f32 %v561, %v561
    %v626 = vmul.f32 %v562, %v562
    %v627 = vmul.f32 %v563, %v563
    %v628 = vmul.f32 %v564, %v564
    %v629 = vmul.f32 %v565, %v565
    %v630 = vmul.f32 %v566, %v566
    %v631 = vmul.f32 %v567, %v567
    %v632 = vmul.f32 %v568, %v568
    %v633 = vmul.f32 %v569, %v569
    %v634 = vmul.f32 %v570, %v570
    %v635 = vmul.f32 %v571, %v571
    %v636 = vmul.f32 %v572, %v572
    %v637 = vmul.f32 %v573, %v573
    %v638 = vmul.f32 %v574, %v574
    %v639 = vmul.f32 %v575, %v575
    %v640 = vmul.f32 %v576, %v576
    %v641 = vmul.f32 %v577, %v577
    %v642 = vmul.f32 %v578, %v578
    %v643 = vmul.f32 %v579, %v579
    %v644 = vmul.f32 %v580, %v580
    %v645 = vmul.f32 %v581, %v581
    %v646 = vmul.f32 %v582, %v582
    %v647 = vmul.f32 %v583, %v583
    %v648 = vmul.f32 %v584, %v584
    %v649 = vmul.f32 %v585, %v585
    %v650 = vmul.f32 %v586, %v586
    %v651 = vmul.f32 %v587, %v587
    %v652 = vmul.f32 %v588, %v588
    %v653 = vmul.f32 %v589, %v589
    %v654 = vmul.f32 %v590, %v590
    %v655 = vmul.f32 %v591, %v591
    %v656 = vmul.f32 %v592, %v592
    %v657 = vmul.f32 %v593, %v593
    %v658 = vmul.f32 %v594, %v594
    %v659 = vmul.f32 %v595, %v595
    %v660 = vmul.f32 %v596, %v596
    %v661 = vmul.f32 %v597, %v597
    %v662 = vmul.f32 %v598, %v598
    %v663 = vmul.f32 %v599, %v599
    %v664 = vmul.f32 %v600, %v600
    %v665 = vmul.f32 %v601, %v601
    %v666 = vmul.f32 %v602, %v602
    %v667 = vmul.f32 %v603, %v603
    %v668 = vmul.f32 %v604, %v604
    %v669 = vmul.f32 %v605, %v605
    %v670 = vmul.f32 %v606, %v606
    %v671 = vmul.f32 %v607, %v607
    %v672 = vmul.f32 %v608, %v608
    %v673 = vmul.f32 %v609, %v609
    %v674 = vmul.f32 %v610, %v610
    %v675 = vmul.f32 %v611, %v611
    %v676 = vmul.f32 %v612, %v612
    %v677 = vmul.f32 %v613, %v613
    %v678 = vmul.f32 %v614, %v614
    %v679 = vadd.f32 %v615, %v616
    %v680 = vadd.f32 %v679, %v617
    %v681 = vadd.f32 %v680, %v618
    %682 = vadd.xlane.f32.xlu0 %v681
    %v683 = vpop.xlane.xlu0 %682
    %v684 = vadd.f32 %v619, %v620
    %v685 = vadd.f32 %v684, %v621
    %v686 = vadd.f32 %v685, %v622
    %687 = vadd.xlane.f32.xlu0 %v686
    %v688 = vpop.xlane.xlu0 %687
    %v689 = vadd.f32 %v623, %v624
    %v690 = vadd.f32 %v689, %v625
    %v691 = vadd.f32 %v690, %v626
    %692 = vadd.xlane.f32.xlu0 %v691
    %v693 = vpop.xlane.xlu0 %692
    %v694 = vadd.f32 %v627, %v628
    %v695 = vadd.f32 %v694, %v629
    %v696 = vadd.f32 %v695, %v630
    %697 = vadd.xlane.f32.xlu0 %v696
    %v698 = vpop.xlane.xlu0 %697
    %v699 = vadd.f32 %v631, %v632
    %v700 = vadd.f32 %v699, %v633
    %v701 = vadd.f32 %v700, %v634
    %702 = vadd.xlane.f32.xlu0 %v701
    %v703 = vpop.xlane.xlu0 %702
    %v704 = vadd.f32 %v635, %v636
    %v705 = vadd.f32 %v704, %v637
    %v706 = vadd.f32 %v705, %v638
    %707 = vadd.xlane.f32.xlu0 %v706
    %v708 = vpop.xlane.xlu0 %707
    %v709 = vadd.f32 %v639, %v640
    %v710 = vadd.f32 %v709, %v641
    %v711 = vadd.f32 %v710, %v642
    %712 = vadd.xlane.f32.xlu0 %v711
    %v713 = vpop.xlane.xlu0 %712
    %v714 = vadd.f32 %v643, %v644
    %v715 = vadd.f32 %v714, %v645
    %v716 = vadd.f32 %v715, %v646
    %717 = vadd.xlane.f32.xlu0 %v716
    %v718 = vpop.xlane.xlu0 %717
    %v719 = vadd.f32 %v647, %v648
    %v720 = vadd.f32 %v719, %v649
    %v721 = vadd.f32 %v720, %v650
    %722 = vadd.xlane.f32.xlu0 %v721
    %v723 = vpop.xlane.xlu0 %722
    %v724 = vadd.f32 %v651, %v652
    %v725 = vadd.f32 %v724, %v653
    %v726 = vadd.f32 %v725, %v654
    %727 = vadd.xlane.f32.xlu0 %v726
    %v728 = vpop.xlane.xlu0 %727
    %v729 = vadd.f32 %v655, %v656
    %v730 = vadd.f32 %v729, %v657
    %v731 = vadd.f32 %v730, %v658
    %732 = vadd.xlane.f32.xlu0 %v731
    %v733 = vpop.xlane.xlu0 %732
    %v734 = vadd.f32 %v659, %v660
    %v735 = vadd.f32 %v734, %v661
    %v736 = vadd.f32 %v735, %v662
    %737 = vadd.xlane.f32.xlu0 %v736
    %v738 = vpop.xlane.xlu0 %737
    %v739 = vadd.f32 %v663, %v664
    %v740 = vadd.f32 %v739, %v665
    %v741 = vadd.f32 %v740, %v666
    %742 = vadd.xlane.f32.xlu0 %v741
    %v743 = vpop.xlane.xlu0 %742
    %v744 = vadd.f32 %v667, %v668
    %v745 = vadd.f32 %v744, %v669
    %v746 = vadd.f32 %v745, %v670
    %747 = vadd.xlane.f32.xlu0 %v746
    %v748 = vpop.xlane.xlu0 %747
    %v749 = vadd.f32 %v671, %v672
    %v750 = vadd.f32 %v749, %v673
    %v751 = vadd.f32 %v750, %v674
    %752 = vadd.xlane.f32.xlu0 %v751
    %v753 = vpop.xlane.xlu0 %752
    %v754 = vadd.f32 %v675, %v676
    %v755 = vadd.f32 %v754, %v677
    %v756 = vadd.f32 %v755, %v678
    %757 = vadd.xlane.f32.xlu0 %v756
    %v758 = vpop.xlane.xlu0 %757
    %v759 = vmul.f32 %v683, %v534
    %v760 = vmul.f32 %v688, %v534
    %v761 = vmul.f32 %v693, %v534
    %v762 = vmul.f32 %v698, %v534
    %v763 = vmul.f32 %v703, %v534
    %v764 = vmul.f32 %v708, %v534
    %v765 = vmul.f32 %v713, %v534
    %v766 = vmul.f32 %v718, %v534
    %v767 = vmul.f32 %v723, %v534
    %v768 = vmul.f32 %v728, %v534
    %v769 = vmul.f32 %v733, %v534
    %v770 = vmul.f32 %v738, %v534
    %v771 = vmul.f32 %v743, %v534
    %v772 = vmul.f32 %v748, %v534
    %v773 = vmul.f32 %v753, %v534
    %v774 = vmul.f32 %v758, %v534
    %v775 = vadd.f32 %v759, 1e-05
    %v776 = vadd.f32 %v760, 1e-05
    %v777 = vadd.f32 %v761, 1e-05
    %v778 = vadd.f32 %v762, 1e-05
    %v779 = vadd.f32 %v763, 1e-05
    %v780 = vadd.f32 %v764, 1e-05
    %v781 = vadd.f32 %v765, 1e-05
    %v782 = vadd.f32 %v766, 1e-05
    %v783 = vadd.f32 %v767, 1e-05
    %v784 = vadd.f32 %v768, 1e-05
    %v785 = vadd.f32 %v769, 1e-05
    %v786 = vadd.f32 %v770, 1e-05
    %v787 = vadd.f32 %v771, 1e-05
    %v788 = vadd.f32 %v772, 1e-05
    %v789 = vadd.f32 %v773, 1e-05
    %v790 = vadd.f32 %v774, 1e-05
    %v791 = vrsqrt.pop %v775
    %v792 = vmul.f32 %v791, %v775
    %v793 = vmul.f32 %v792, %v791
    %v794 = vmul.f32 0.5, %v793
    %v795 = vsub.f32 1.5, %v794
    %v796 = vmul.f32 %v791, %v795
    %vm797 = vweird.f32 %v775
    %vm798 = vweird.f32 %v791
    %vm799 = vmor %vm797, %vm798
    %v800 = vsel %vm799, %v791, %v796
    %v801 = vrsqrt.pop %v776
    %v802 = vmul.f32 %v801, %v776
    %v803 = vmul.f32 %v802, %v801
    %v804 = vmul.f32 0.5, %v803
    %v805 = vsub.f32 1.5, %v804
    %v806 = vmul.f32 %v801, %v805
    %vm807 = vweird.f32 %v776
    %vm808 = vweird.f32 %v801
    %vm809 = vmor %vm807, %vm808
    %v810 = vsel %vm809, %v801, %v806
    %v811 = vrsqrt.pop %v777
    %v812 = vmul.f32 %v811, %v777
    %v813 = vmul.f32 %v812, %v811
    %v814 = vmul.f32 0.5, %v813
    %v815 = vsub.f32 1.5, %v814
    %v816 = vmul.f32 %v811, %v815
    %vm817 = vweird.f32 %v777
    %vm818 = vweird.f32 %v811
    %vm819 = vmor %vm817, %vm818
    %v820 = vsel %vm819, %v811, %v816
    %v821 = vrsqrt.pop %v778
    %v822 = vmul.f32 %v821, %v778
    %v823 = vmul.f32 %v822, %v821
    %v824 = vmul.f32 0.5, %v823
    %v825 = vsub.f32 1.5, %v824
    %v826 = vmul.f32 %v821, %v825
    %vm827 = vweird.f32 %v778
    %vm828 = vweird.f32 %v821
    %vm829 = vmor %vm827, %vm828
    %v830 = vsel %vm829, %v821, %v826
    %v831 = vrsqrt.pop %v779
    %v832 = vmul.f32 %v831, %v779
    %v833 = vmul.f32 %v832, %v831
    %v834 = vmul.f32 0.5, %v833
    %v835 = vsub.f32 1.5, %v834
    %v836 = vmul.f32 %v831, %v835
    %vm837 = vweird.f32 %v779
    %vm838 = vweird.f32 %v831
    %vm839 = vmor %vm837, %vm838
    %v840 = vsel %vm839, %v831, %v836
    %v841 = vrsqrt.pop %v780
    %v842 = vmul.f32 %v841, %v780
    %v843 = vmul.f32 %v842, %v841
    %v844 = vmul.f32 0.5, %v843
    %v845 = vsub.f32 1.5, %v844
    %v846 = vmul.f32 %v841, %v845
    %vm847 = vweird.f32 %v780
    %vm848 = vweird.f32 %v841
    %vm849 = vmor %vm847, %vm848
    %v850 = vsel %vm849, %v841, %v846
    %v851 = vrsqrt.pop %v781
    %v852 = vmul.f32 %v851, %v781
    %v853 = vmul.f32 %v852, %v851
    %v854 = vmul.f32 0.5, %v853
    %v855 = vsub.f32 1.5, %v854
    %v856 = vmul.f32 %v851, %v855
    %vm857 = vweird.f32 %v781
    %vm858 = vweird.f32 %v851
    %vm859 = vmor %vm857, %vm858
    %v860 = vsel %vm859, %v851, %v856
    %v861 = vrsqrt.pop %v782
    %v862 = vmul.f32 %v861, %v782
    %v863 = vmul.f32 %v862, %v861
    %v864 = vmul.f32 0.5, %v863
    %v865 = vsub.f32 1.5, %v864
    %v866 = vmul.f32 %v861, %v865
    %vm867 = vweird.f32 %v782
    %vm868 = vweird.f32 %v861
    %vm869 = vmor %vm867, %vm868
    %v870 = vsel %vm869, %v861, %v866
    %v871 = vrsqrt.pop %v783
    %v872 = vmul.f32 %v871, %v783
    %v873 = vmul.f32 %v872, %v871
    %v874 = vmul.f32 0.5, %v873
    %v875 = vsub.f32 1.5, %v874
    %v876 = vmul.f32 %v871, %v875
    %vm877 = vweird.f32 %v783
    %vm878 = vweird.f32 %v871
    %vm879 = vmor %vm877, %vm878
    %v880 = vsel %vm879, %v871, %v876
    %v881 = vrsqrt.pop %v784
    %v882 = vmul.f32 %v881, %v784
    %v883 = vmul.f32 %v882, %v881
    %v884 = vmul.f32 0.5, %v883
    %v885 = vsub.f32 1.5, %v884
    %v886 = vmul.f32 %v881, %v885
    %vm887 = vweird.f32 %v784
    %vm888 = vweird.f32 %v881
    %vm889 = vmor %vm887, %vm888
    %v890 = vsel %vm889, %v881, %v886
    %v891 = vrsqrt.pop %v785
    %v892 = vmul.f32 %v891, %v785
    %v893 = vmul.f32 %v892, %v891
    %v894 = vmul.f32 0.5, %v893
    %v895 = vsub.f32 1.5, %v894
    %v896 = vmul.f32 %v891, %v895
    %vm897 = vweird.f32 %v785
    %vm898 = vweird.f32 %v891
    %vm899 = vmor %vm897, %vm898
    %v900 = vsel %vm899, %v891, %v896
    %v901 = vrsqrt.pop %v786
    %v902 = vmul.f32 %v901, %v786
    %v903 = vmul.f32 %v902, %v901
    %v904 = vmul.f32 0.5, %v903
    %v905 = vsub.f32 1.5, %v904
    %v906 = vmul.f32 %v901, %v905
    %vm907 = vweird.f32 %v786
    %vm908 = vweird.f32 %v901
    %vm909 = vmor %vm907, %vm908
    %v910 = vsel %vm909, %v901, %v906
    %v911 = vrsqrt.pop %v787
    %v912 = vmul.f32 %v911, %v787
    %v913 = vmul.f32 %v912, %v911
    %v914 = vmul.f32 0.5, %v913
    %v915 = vsub.f32 1.5, %v914
    %v916 = vmul.f32 %v911, %v915
    %vm917 = vweird.f32 %v787
    %vm918 = vweird.f32 %v911
    %vm919 = vmor %vm917, %vm918
    %v920 = vsel %vm919, %v911, %v916
    %v921 = vrsqrt.pop %v788
    %v922 = vmul.f32 %v921, %v788
    %v923 = vmul.f32 %v922, %v921
    %v924 = vmul.f32 0.5, %v923
    %v925 = vsub.f32 1.5, %v924
    %v926 = vmul.f32 %v921, %v925
    %vm927 = vweird.f32 %v788
    %vm928 = vweird.f32 %v921
    %vm929 = vmor %vm927, %vm928
    %v930 = vsel %vm929, %v921, %v926
    %v931 = vrsqrt.pop %v789
    %v932 = vmul.f32 %v931, %v789
    %v933 = vmul.f32 %v932, %v931
    %v934 = vmul.f32 0.5, %v933
    %v935 = vsub.f32 1.5, %v934
    %v936 = vmul.f32 %v931, %v935
    %vm937 = vweird.f32 %v789
    %vm938 = vweird.f32 %v931
    %vm939 = vmor %vm937, %vm938
    %v940 = vsel %vm939, %v931, %v936
    %v941 = vrsqrt.pop %v790
    %v942 = vmul.f32 %v941, %v790
    %v943 = vmul.f32 %v942, %v941
    %v944 = vmul.f32 0.5, %v943
    %v945 = vsub.f32 1.5, %v944
    %v946 = vmul.f32 %v941, %v945
    %vm947 = vweird.f32 %v790
    %vm948 = vweird.f32 %v941
    %vm949 = vmor %vm947, %vm948
    %v950 = vsel %vm949, %v941, %v946
    %v951 = vmul.f32 %v551, %v800
    %v952 = vmul.f32 %v552, %v800
    %v953 = vmul.f32 %v553, %v800
    %v954 = vmul.f32 %v554, %v800
    %v955 = vmul.f32 %v555, %v810
    %v956 = vmul.f32 %v556, %v810
    %v957 = vmul.f32 %v557, %v810
    %v958 = vmul.f32 %v558, %v810
    %v959 = vmul.f32 %v559, %v820
    %v960 = vmul.f32 %v560, %v820
    %v961 = vmul.f32 %v561, %v820
    %v962 = vmul.f32 %v562, %v820
    %v963 = vmul.f32 %v563, %v830
    %v964 = vmul.f32 %v564, %v830
    %v965 = vmul.f32 %v565, %v830
    %v966 = vmul.f32 %v566, %v830
    %v967 = vmul.f32 %v567, %v840
    %v968 = vmul.f32 %v568, %v840
    %v969 = vmul.f32 %v569, %v840
    %v970 = vmul.f32 %v570, %v840
    %v971 = vmul.f32 %v571, %v850
    %v972 = vmul.f32 %v572, %v850
    %v973 = vmul.f32 %v573, %v850
    %v974 = vmul.f32 %v574, %v850
    %v975 = vmul.f32 %v575, %v860
    %v976 = vmul.f32 %v576, %v860
    %v977 = vmul.f32 %v577, %v860
    %v978 = vmul.f32 %v578, %v860
    %v979 = vmul.f32 %v579, %v870
    %v980 = vmul.f32 %v580, %v870
    %v981 = vmul.f32 %v581, %v870
    %v982 = vmul.f32 %v582, %v870
    %v983 = vmul.f32 %v583, %v880
    %v984 = vmul.f32 %v584, %v880
    %v985 = vmul.f32 %v585, %v880
    %v986 = vmul.f32 %v586, %v880
    %v987 = vmul.f32 %v587, %v890
    %v988 = vmul.f32 %v588, %v890
    %v989 = vmul.f32 %v589, %v890
    %v990 = vmul.f32 %v590, %v890
    %v991 = vmul.f32 %v591, %v900
    %v992 = vmul.f32 %v592, %v900
    %v993 = vmul.f32 %v593, %v900
    %v994 = vmul.f32 %v594, %v900
    %v995 = vmul.f32 %v595, %v910
    %v996 = vmul.f32 %v596, %v910
    %v997 = vmul.f32 %v597, %v910
    %v998 = vmul.f32 %v598, %v910
    %v999 = vmul.f32 %v599, %v920
    %v1000 = vmul.f32 %v600, %v920
    %v1001 = vmul.f32 %v601, %v920
    %v1002 = vmul.f32 %v602, %v920
    %v1003 = vmul.f32 %v603, %v930
    %v1004 = vmul.f32 %v604, %v930
    %v1005 = vmul.f32 %v605, %v930
    %v1006 = vmul.f32 %v606, %v930
    %v1007 = vmul.f32 %v607, %v940
    %v1008 = vmul.f32 %v608, %v940
    %v1009 = vmul.f32 %v609, %v940
    %v1010 = vmul.f32 %v610, %v940
    %v1011 = vmul.f32 %v611, %v950
    %v1012 = vmul.f32 %v612, %v950
    %v1013 = vmul.f32 %v613, %v950
    %v1014 = vmul.f32 %v614, %v950
    %v1016 = vperm.slane %v446, 0
    %v1017 = vperm.slane %v446, 1
    %v1018 = vperm.slane %v446, 2
    %v1019 = vperm.slane %v446, 3
    %v1024 = vmul.f32 %v951, %v1016
    %v1025 = vmul.f32 %v952, %v1017
    %v1026 = vmul.f32 %v953, %v1018
    %v1027 = vmul.f32 %v954, %v1019
    %v1028 = vmul.f32 %v955, %v1016
    %v1029 = vmul.f32 %v956, %v1017
    %v1030 = vmul.f32 %v957, %v1018
    %v1031 = vmul.f32 %v958, %v1019
    %v1032 = vmul.f32 %v959, %v1016
    %v1033 = vmul.f32 %v960, %v1017
    %v1034 = vmul.f32 %v961, %v1018
    %v1035 = vmul.f32 %v962, %v1019
    %v1036 = vmul.f32 %v963, %v1016
    %v1037 = vmul.f32 %v964, %v1017
    %v1038 = vmul.f32 %v965, %v1018
    %v1039 = vmul.f32 %v966, %v1019
    %v1040 = vmul.f32 %v967, %v1016
    %v1041 = vmul.f32 %v968, %v1017
    %v1042 = vmul.f32 %v969, %v1018
    %v1043 = vmul.f32 %v970, %v1019
    %v1044 = vmul.f32 %v971, %v1016
    %v1045 = vmul.f32 %v972, %v1017
    %v1046 = vmul.f32 %v973, %v1018
    %v1047 = vmul.f32 %v974, %v1019
    %v1048 = vmul.f32 %v975, %v1016
    %v1049 = vmul.f32 %v976, %v1017
    %v1050 = vmul.f32 %v977, %v1018
    %v1051 = vmul.f32 %v978, %v1019
    %v1052 = vmul.f32 %v979, %v1016
    %v1053 = vmul.f32 %v980, %v1017
    %v1054 = vmul.f32 %v981, %v1018
    %v1055 = vmul.f32 %v982, %v1019
    %v1056 = vmul.f32 %v983, %v1016
    %v1057 = vmul.f32 %v984, %v1017
    %v1058 = vmul.f32 %v985, %v1018
    %v1059 = vmul.f32 %v986, %v1019
    %v1060 = vmul.f32 %v987, %v1016
    %v1061 = vmul.f32 %v988, %v1017
    %v1062 = vmul.f32 %v989, %v1018
    %v1063 = vmul.f32 %v990, %v1019
    %v1064 = vmul.f32 %v991, %v1016
    %v1065 = vmul.f32 %v992, %v1017
    %v1066 = vmul.f32 %v993, %v1018
    %v1067 = vmul.f32 %v994, %v1019
    %v1068 = vmul.f32 %v995, %v1016
    %v1069 = vmul.f32 %v996, %v1017
    %v1070 = vmul.f32 %v997, %v1018
    %v1071 = vmul.f32 %v998, %v1019
    %v1072 = vmul.f32 %v999, %v1016
    %v1073 = vmul.f32 %v1000, %v1017
    %v1074 = vmul.f32 %v1001, %v1018
    %v1075 = vmul.f32 %v1002, %v1019
    %v1076 = vmul.f32 %v1003, %v1016
    %v1077 = vmul.f32 %v1004, %v1017
    %v1078 = vmul.f32 %v1005, %v1018
    %v1079 = vmul.f32 %v1006, %v1019
    %v1080 = vmul.f32 %v1007, %v1016
    %v1081 = vmul.f32 %v1008, %v1017
    %v1082 = vmul.f32 %v1009, %v1018
    %v1083 = vmul.f32 %v1010, %v1019
    %v1084 = vmul.f32 %v1011, %v1016
    %v1085 = vmul.f32 %v1012, %v1017
    %v1086 = vmul.f32 %v1013, %v1018
    %v1087 = vmul.f32 %v1014, %v1019
    %v1089 = vperm.slane %v447, 0
    %v1090 = vperm.slane %v447, 1
    %v1091 = vperm.slane %v447, 2
    %v1092 = vperm.slane %v447, 3
    %v1097 = vadd.f32 %v1024, %v1089
    %v1098 = vadd.f32 %v1025, %v1090
    %v1099 = vadd.f32 %v1026, %v1091
    %v1100 = vadd.f32 %v1027, %v1092
    %v1101 = vadd.f32 %v1028, %v1089
    %v1102 = vadd.f32 %v1029, %v1090
    %v1103 = vadd.f32 %v1030, %v1091
    %v1104 = vadd.f32 %v1031, %v1092
    %v1105 = vadd.f32 %v1032, %v1089
    %v1106 = vadd.f32 %v1033, %v1090
    %v1107 = vadd.f32 %v1034, %v1091
    %v1108 = vadd.f32 %v1035, %v1092
    %v1109 = vadd.f32 %v1036, %v1089
    %v1110 = vadd.f32 %v1037, %v1090
    %v1111 = vadd.f32 %v1038, %v1091
    %v1112 = vadd.f32 %v1039, %v1092
    %v1113 = vadd.f32 %v1040, %v1089
    %v1114 = vadd.f32 %v1041, %v1090
    %v1115 = vadd.f32 %v1042, %v1091
    %v1116 = vadd.f32 %v1043, %v1092
    %v1117 = vadd.f32 %v1044, %v1089
    %v1118 = vadd.f32 %v1045, %v1090
    %v1119 = vadd.f32 %v1046, %v1091
    %v1120 = vadd.f32 %v1047, %v1092
    %v1121 = vadd.f32 %v1048, %v1089
    %v1122 = vadd.f32 %v1049, %v1090
    %v1123 = vadd.f32 %v1050, %v1091
    %v1124 = vadd.f32 %v1051, %v1092
    %v1125 = vadd.f32 %v1052, %v1089
    %v1126 = vadd.f32 %v1053, %v1090
    %v1127 = vadd.f32 %v1054, %v1091
    %v1128 = vadd.f32 %v1055, %v1092
    %v1129 = vadd.f32 %v1056, %v1089
    %v1130 = vadd.f32 %v1057, %v1090
    %v1131 = vadd.f32 %v1058, %v1091
    %v1132 = vadd.f32 %v1059, %v1092
    %v1133 = vadd.f32 %v1060, %v1089
    %v1134 = vadd.f32 %v1061, %v1090
    %v1135 = vadd.f32 %v1062, %v1091
    %v1136 = vadd.f32 %v1063, %v1092
    %v1137 = vadd.f32 %v1064, %v1089
    %v1138 = vadd.f32 %v1065, %v1090
    %v1139 = vadd.f32 %v1066, %v1091
    %v1140 = vadd.f32 %v1067, %v1092
    %v1141 = vadd.f32 %v1068, %v1089
    %v1142 = vadd.f32 %v1069, %v1090
    %v1143 = vadd.f32 %v1070, %v1091
    %v1144 = vadd.f32 %v1071, %v1092
    %v1145 = vadd.f32 %v1072, %v1089
    %v1146 = vadd.f32 %v1073, %v1090
    %v1147 = vadd.f32 %v1074, %v1091
    %v1148 = vadd.f32 %v1075, %v1092
    %v1149 = vadd.f32 %v1076, %v1089
    %v1150 = vadd.f32 %v1077, %v1090
    %v1151 = vadd.f32 %v1078, %v1091
    %v1152 = vadd.f32 %v1079, %v1092
    %v1153 = vadd.f32 %v1080, %v1089
    %v1154 = vadd.f32 %v1081, %v1090
    %v1155 = vadd.f32 %v1082, %v1091
    %v1156 = vadd.f32 %v1083, %v1092
    %v1157 = vadd.f32 %v1084, %v1089
    %v1158 = vadd.f32 %v1085, %v1090
    %v1159 = vadd.f32 %v1086, %v1091
    %v1160 = vadd.f32 %v1087, %v1092
    %1161 = vst [vmem:[%s5] sm:$0xff] %v1097
    %1162 = vst [vmem:[%s5 + $0x8] sm:$0xff] %v1098
    %1163 = vst [vmem:[%s5 + $0x10] sm:$0xff] %v1099
    %1164 = vst [vmem:[%s5 + $0x18] sm:$0xff] %v1100
    %1165 = vst [vmem:[%s5 + $0x20] sm:$0xff] %v1101
    %1166 = vst [vmem:[%s5 + $0x28] sm:$0xff] %v1102
    %1167 = vst [vmem:[%s5 + $0x30] sm:$0xff] %v1103
    %1168 = vst [vmem:[%s5 + $0x38] sm:$0xff] %v1104
    %1169 = vst [vmem:[%s5 + $0x40] sm:$0xff] %v1105
    %1170 = vst [vmem:[%s5 + $0x48] sm:$0xff] %v1106
    %1171 = vst [vmem:[%s5 + $0x50] sm:$0xff] %v1107
    %1172 = vst [vmem:[%s5 + $0x58] sm:$0xff] %v1108
    %1173 = vst [vmem:[%s5 + $0x60] sm:$0xff] %v1109
    %1174 = vst [vmem:[%s5 + $0x68] sm:$0xff] %v1110
    %1175 = vst [vmem:[%s5 + $0x70] sm:$0xff] %v1111
    %1176 = vst [vmem:[%s5 + $0x78] sm:$0xff] %v1112
    %1177 = vst [vmem:[%s5 + $0x80] sm:$0xff] %v1113
    %1178 = vst [vmem:[%s5 + $0x88] sm:$0xff] %v1114
    %1179 = vst [vmem:[%s5 + $0x90] sm:$0xff] %v1115
    %1180 = vst [vmem:[%s5 + $0x98] sm:$0xff] %v1116
    %1181 = vst [vmem:[%s5 + $0xa0] sm:$0xff] %v1117
    %1182 = vst [vmem:[%s5 + $0xa8] sm:$0xff] %v1118
    %1183 = vst [vmem:[%s5 + $0xb0] sm:$0xff] %v1119
    %1184 = vst [vmem:[%s5 + $0xb8] sm:$0xff] %v1120
    %1185 = vst [vmem:[%s5 + $0xc0] sm:$0xff] %v1121
    %1186 = vst [vmem:[%s5 + $0xc8] sm:$0xff] %v1122
    %1187 = vst [vmem:[%s5 + $0xd0] sm:$0xff] %v1123
    %1188 = vst [vmem:[%s5 + $0xd8] sm:$0xff] %v1124
    %1189 = vst [vmem:[%s5 + $0xe0] sm:$0xff] %v1125
    %1190 = vst [vmem:[%s5 + $0xe8] sm:$0xff] %v1126
    %1191 = vst [vmem:[%s5 + $0xf0] sm:$0xff] %v1127
    %1192 = vst [vmem:[%s5 + $0xf8] sm:$0xff] %v1128
    %1193 = vst [vmem:[%s5 + $0x100] sm:$0xff] %v1129
    %1194 = vst [vmem:[%s5 + $0x108] sm:$0xff] %v1130
    %1195 = vst [vmem:[%s5 + $0x110] sm:$0xff] %v1131
    %1196 = vst [vmem:[%s5 + $0x118] sm:$0xff] %v1132
    %1197 = vst [vmem:[%s5 + $0x120] sm:$0xff] %v1133
    %1198 = vst [vmem:[%s5 + $0x128] sm:$0xff] %v1134
    %1199 = vst [vmem:[%s5 + $0x130] sm:$0xff] %v1135
    %1200 = vst [vmem:[%s5 + $0x138] sm:$0xff] %v1136
    %1201 = vst [vmem:[%s5 + $0x140] sm:$0xff] %v1137
    %1202 = vst [vmem:[%s5 + $0x148] sm:$0xff] %v1138
    %1203 = vst [vmem:[%s5 + $0x150] sm:$0xff] %v1139
    %1204 = vst [vmem:[%s5 + $0x158] sm:$0xff] %v1140
    %1205 = vst [vmem:[%s5 + $0x160] sm:$0xff] %v1141
    %1206 = vst [vmem:[%s5 + $0x168] sm:$0xff] %v1142
    %1207 = vst [vmem:[%s5 + $0x170] sm:$0xff] %v1143
    %1208 = vst [vmem:[%s5 + $0x178] sm:$0xff] %v1144
    %1209 = vst [vmem:[%s5 + $0x180] sm:$0xff] %v1145
    %1210 = vst [vmem:[%s5 + $0x188] sm:$0xff] %v1146
    %1211 = vst [vmem:[%s5 + $0x190] sm:$0xff] %v1147
    %1212 = vst [vmem:[%s5 + $0x198] sm:$0xff] %v1148
    %1213 = vst [vmem:[%s5 + $0x1a0] sm:$0xff] %v1149
    %1214 = vst [vmem:[%s5 + $0x1a8] sm:$0xff] %v1150
    %1215 = vst [vmem:[%s5 + $0x1b0] sm:$0xff] %v1151
    %1216 = vst [vmem:[%s5 + $0x1b8] sm:$0xff] %v1152
    %1217 = vst [vmem:[%s5 + $0x1c0] sm:$0xff] %v1153
    %1218 = vst [vmem:[%s5 + $0x1c8] sm:$0xff] %v1154
    %1219 = vst [vmem:[%s5 + $0x1d0] sm:$0xff] %v1155
    %1220 = vst [vmem:[%s5 + $0x1d8] sm:$0xff] %v1156
    %1221 = vst [vmem:[%s5 + $0x1e0] sm:$0xff] %v1157
    %1222 = vst [vmem:[%s5 + $0x1e8] sm:$0xff] %v1158
    %1223 = vst [vmem:[%s5 + $0x1f0] sm:$0xff] %v1159
    %1224 = vst [vmem:[%s5 + $0x1f8] sm:$0xff] %v1160
    // Predicated region
    $region38: #{layer_norm_lstm.2} parent=1 // pred_check
      _
    $region39: #{layer_norm_lstm.2} parent=1 // pred_check_branch
      %1226 = sbr.rel (0) target = $region41
    $region40: #{layer_norm_lstm.2} parent=1 // pred_region
      _
    $region41: #{layer_norm_lstm.2} parent=1 // pred_fallthru
      _
    // Predicated region
    $region42: #{layer_norm_lstm.2} parent=1 // pred_check
      _
    $region43: #{layer_norm_lstm.2} parent=1 // pred_check_branch
      %1228 = sbr.rel (0) target = $region45
    $region44: #{layer_norm_lstm.2} parent=1 // pred_region
      _
    $region45: #{layer_norm_lstm.2} parent=1 // pred_fallthru
      _
    %1229 = vsyncpa [#allocation3], 1
    %1230 = vsyncpa [#allocation5], 1
    %1231 = vsyncpa [#allocation8], 1

</llo_original>
